<compile_context>
chip_gen: v7x
topology: tpu7x:2x2x1
jax: 0.10.0
libtpu: 0.0.40
codegen_flags: <defaults>
</compile_context>

<pallas_src>
import jax
import jax.numpy as jnp
from jax.experimental import pallas as pl
from jax.experimental.pallas import tpu as pltpu


def _round_up(a, b):
    return ((a + b - 1) // b) * b


# ----------------------------------------------------------------------------
# Pallas kernel: three well-shaped matmuls (conv1+bn1, conv2+bn2, classifier)
# ----------------------------------------------------------------------------
def _aux_head_kernel(x_ref, w1_ref, b1_ref, w2_ref, b2_ref, wl_ref, bl_ref,
                     out_ref):
    # x_ref: (bN, Kp) bf16 pooled input; weight refs bf16; biases/output f32.
    h1 = jnp.dot(x_ref[...], w1_ref[...],
                 preferred_element_type=jnp.float32)            # (bN, 512)
    h1 = jnp.maximum(h1 + b1_ref[...], 0.0)

    h2 = jnp.dot(h1.astype(jnp.bfloat16), w2_ref[...],
                 preferred_element_type=jnp.float32)            # (bN, 768)
    h2 = jnp.maximum(h2 + b2_ref[...], 0.0)

    y = jnp.dot(h2.astype(jnp.bfloat16), wl_ref[...],
                preferred_element_type=jnp.float32)             # (bN, out_pad)
    out_ref[...] = y + bl_ref[...]


def _fold_bn(gamma, beta, mean, var, eps=1e-5):
    scale = gamma / jnp.sqrt(var + eps)
    shift = beta - mean * scale
    return scale.reshape(1, -1), shift.reshape(1, -1)


def _choose_block_n(N, requested):
    if requested is not None:
        return _round_up(requested, 128)       # never below one MXU row tile
    if N <= 512:
        # Single grid step for small batches: no pipeline prologue/epilogue.
        return _round_up(max(N, 128), 128)
    # Larger batches: 256-row tiles -> full 256-wide MXU passes on v6e/v7x
    # (2x128 on v5e) and >=2 grid steps so v7x megacore keeps both TCs busy.
    return 256


def auxiliary_head_cifar(x, params, num_classes, *, block_n=None):
    """x: (N, C, 8, 8) float32 NCHW (PyTorch layout). Returns (N, num_classes)."""
    N, C, H, W = x.shape
    assert H == 8 and W == 8, "AuxiliaryHeadCIFAR assumes an 8x8 spatial input"

    # ---- XLA preamble: AvgPool2d(5, stride=3) in f32, channels-last ----------
    # 8x8 -> 2x2; every 5x5 window is fully inside the image, so
    # count_include_pad is irrelevant.  Position order is (h, w) row-major to
    # match the (pos, in_ch) row order of the folded 2x2-conv weight below.
    xt = jnp.transpose(x, (0, 2, 3, 1))                          # (N, 8, 8, C)
    pooled = jnp.concatenate(
        [xt[:, 0:5, 0:5, :].mean(axis=(1, 2)),                   # pos (0,0)
         xt[:, 0:5, 3:8, :].mean(axis=(1, 2)),                   # pos (0,1)
         xt[:, 3:8, 0:5, :].mean(axis=(1, 2)),                   # pos (1,0)
         xt[:, 3:8, 3:8, :].mean(axis=(1, 2))], axis=-1)         # (N, 4*C)

    # ---- host-side weight folding (all in f32) --------------------------------
    # conv1 (128,C,1,1) -> (C,128), BN1 scale folded; block-diagonal over the 4
    # pooled positions so h1 columns come out (pos, out_ch)-ordered.
    w1 = params["conv1_w"].reshape(128, C).T                     # (C, 128)
    s1, b1 = _fold_bn(params["bn1_gamma"], params["bn1_beta"],
                      params["bn1_mean"], params["bn1_var"])
    w1_blk = jnp.kron(jnp.eye(4, dtype=jnp.float32), w1 * s1)    # (4*C, 512)
    b1t = jnp.tile(b1, (1, 4))                                   # (1, 512)

    # conv2 (768,128,2,2) -> (pos, in_ch)-ordered (512,768), BN2 scale folded.
    s2, b2 = _fold_bn(params["bn2_gamma"], params["bn2_beta"],
                      params["bn2_mean"], params["bn2_var"])
    w2 = jnp.transpose(params["conv2_w"], (2, 3, 1, 0)).reshape(512, 768) * s2

    # classifier, padded to a lane-dense (768, 128*k) slab (no masked stores).
    out_pad = _round_up(max(num_classes, 128), 128)
    wl = jnp.zeros((768, out_pad), jnp.float32).at[:, :num_classes].set(
        params["lin_w"].T)
    bl = jnp.zeros((1, out_pad), jnp.float32).at[:, :num_classes].set(
        params["lin_b"].reshape(1, -1))

    # ---- padding: K to a 128 multiple, batch to a block_n multiple -----------
    block_n = _choose_block_n(N, block_n)
    n_pad = _round_up(N, block_n)
    k_pad = _round_up(4 * C, 128)

    x_in = jnp.zeros((n_pad, k_pad), jnp.float32).at[:N, :4 * C].set(pooled)
    x_in = x_in.astype(jnp.bfloat16)
    w1p = jnp.zeros((k_pad, 512), jnp.float32).at[:4 * C, :].set(w1_blk)

    w1_b = w1p.astype(jnp.bfloat16)
    w2_b = w2.astype(jnp.bfloat16)
    wl_b = wl.astype(jnp.bfloat16)

    # VMEM budget from the actual footprint, 1.5x headroom, capped at the v7x
    # physical 64 MiB.  Resident weights are small (<~1.6 MiB bf16 even at
    # large C) so default double-buffering of them is harmless.
    vmem_bytes = int(1.5 * (
        2 * block_n * k_pad * 2                                   # x tile x2
        + 2 * block_n * out_pad * 4                               # out tile x2
        + 2 * (k_pad * 512 + 512 * 768 + 768 * out_pad) * 2       # weights x2
        + 2 * (512 + 768 + out_pad) * 4                           # biases x2
        + block_n * (512 + 768) * 4                               # h1/h2 f32
    )) + (4 << 20)
    vmem_bytes = min(vmem_bytes, 64 << 20)

    resident = lambda shape: pl.BlockSpec(shape, lambda i: (0, 0))

    out = pl.pallas_call(
        _aux_head_kernel,
        out_shape=jax.ShapeDtypeStruct((n_pad, out_pad), jnp.float32),
        grid=(n_pad // block_n,),
        in_specs=[
            pl.BlockSpec((block_n, k_pad), lambda i: (i, 0)),    # pooled x tile
            resident((k_pad, 512)),                              # conv1+bn1 (blk-diag)
            resident((1, 512)),                                  # bn1 shift
            resident((512, 768)),                                # conv2+bn2
            resident((1, 768)),                                  # bn2 shift
            resident((768, out_pad)),                            # linear W (padded)
            resident((1, out_pad)),                              # linear b (padded)
        ],
        out_specs=pl.BlockSpec((block_n, out_pad), lambda i: (i, 0)),
        compiler_params=pltpu.CompilerParams(
            dimension_semantics=("parallel",),
            vmem_limit_bytes=vmem_bytes),
    )(x_in, w1_b, b1t, w2_b, b2, wl_b, bl)

    # NOTE: rows [N:n_pad) are zero-padded batch rows and hold garbage logits;
    # they are sliced off here and must never be read.
    return out[:N, :num_classes]


# ----------------------------------------------------------------------------
# Pure-JAX reference mirroring the PyTorch forward (eval-mode BatchNorm)
# ----------------------------------------------------------------------------
def reference_forward(x, P, eps=1e-5):
    N, C, _, _ = x.shape
    rows = []
    for i in range(2):
        cols = []
        for j in range(2):
            cols.append(x[:, :, i * 3:i * 3 + 5, j * 3:j * 3 + 5].mean(axis=(2, 3)))
        rows.append(jnp.stack(cols, axis=-1))          # (N, C, 2)
    pooled = jnp.stack(rows, axis=-2)                  # (N, C, 2, 2)

    y1 = jnp.einsum("nchw,oc->nohw", pooled, P["conv1_w"].reshape(128, C))
    y1 = (y1 - P["bn1_mean"][None, :, None, None]) / jnp.sqrt(P["bn1_var"] + eps)[None, :, None, None]
    y1 = y1 * P["bn1_gamma"][None, :, None, None] + P["bn1_beta"][None, :, None, None]
    y1 = jnp.maximum(y1, 0.0)                          # (N, 128, 2, 2)

    y2 = jnp.einsum("nchw,ochw->no", y1, P["conv2_w"])  # (N, 768)
    y2 = (y2 - P["bn2_mean"]) / jnp.sqrt(P["bn2_var"] + eps)
    y2 = y2 * P["bn2_gamma"] + P["bn2_beta"]
    y2 = jnp.maximum(y2, 0.0)

    return y2 @ P["lin_w"].T + P["lin_b"]


def make_params(key, C, num_classes):
    ks = jax.random.split(key, 12)
    return {
        "conv1_w": 0.1 * jax.random.normal(ks[0], (128, C, 1, 1), jnp.float32),
        "bn1_gamma": 1.0 + 0.1 * jax.random.normal(ks[1], (128,), jnp.float32),
        "bn1_beta": 0.1 * jax.random.normal(ks[2], (128,), jnp.float32),
        "bn1_mean": 0.1 * jax.random.normal(ks[3], (128,), jnp.float32),
        "bn1_var": 0.5 + jax.nn.softplus(jax.random.normal(ks[4], (128,), jnp.float32)),
        "conv2_w": 0.05 * jax.random.normal(ks[5], (768, 128, 2, 2), jnp.float32),
        "bn2_gamma": 1.0 + 0.1 * jax.random.normal(ks[6], (768,), jnp.float32),
        "bn2_beta": 0.1 * jax.random.normal(ks[7], (768,), jnp.float32),
        "bn2_mean": 0.1 * jax.random.normal(ks[8], (768,), jnp.float32),
        "bn2_var": 0.5 + jax.nn.softplus(jax.random.normal(ks[9], (768,), jnp.float32)),
        "lin_w": 0.05 * jax.random.normal(ks[10], (num_classes, 768), jnp.float32),
        "lin_b": 0.1 * jax.random.normal(ks[11], (num_classes,), jnp.float32),
    }


if __name__ == "__main__":
    N, C, num_classes = 32, 16, 10
    key = jax.random.PRNGKey(0)
    kx, kp = jax.random.split(key)
    x = jax.random.normal(kx, (N, C, 8, 8), jnp.float32)
    params = make_params(kp, C, num_classes)

    # Default block_n: single 128-row MXU-aligned grid step for this small N.
    logits = auxiliary_head_cifar(x, params, num_classes)
    logits = jax.block_until_ready(logits)

    ref = reference_forward(x, params)
    assert logits.shape == (N, num_classes)
    assert jnp.allclose(logits, ref, rtol=5e-2, atol=5e-2), (
        f"mismatch: max abs diff = {jnp.max(jnp.abs(logits - ref))}")

    print("KERNEL_OK")
</pallas_src>

<mosaic_0001>
module attributes {stable_mosaic.version = 11 : i64} {
  func.func @_aux_head_kernel(%arg0: i32, %arg1: memref<128x128xbf16, #tpu.memory_space<vmem>>, %arg2: memref<128x512xbf16, #tpu.memory_space<vmem>>, %arg3: memref<1x512xf32, #tpu.memory_space<vmem>>, %arg4: memref<512x768xbf16, #tpu.memory_space<vmem>>, %arg5: memref<1x768xf32, #tpu.memory_space<vmem>>, %arg6: memref<768x128xbf16, #tpu.memory_space<vmem>>, %arg7: memref<1x128xf32, #tpu.memory_space<vmem>>, %arg8: memref<128x128xf32, #tpu.memory_space<vmem>>) attributes {dimension_semantics = [#tpu.dimension_semantics<parallel>], iteration_bounds = array<i64: 1>, scalar_prefetch = 0 : i64, scratch_operands = 0 : i64, tpu.core_type = #tpu.core_type<tc>, window_params = [{transform_indices = @transform_0, window_bounds = array<i64: 128, 128>}, {pipeline_mode = #tpu.pipeline_mode<synchronous>, transform_indices = @transform_1, window_bounds = array<i64: 128, 512>}, {pipeline_mode = #tpu.pipeline_mode<synchronous>, transform_indices = @transform_2, window_bounds = array<i64: 1, 512>}, {pipeline_mode = #tpu.pipeline_mode<synchronous>, transform_indices = @transform_3, window_bounds = array<i64: 512, 768>}, {pipeline_mode = #tpu.pipeline_mode<synchronous>, transform_indices = @transform_4, window_bounds = array<i64: 1, 768>}, {pipeline_mode = #tpu.pipeline_mode<synchronous>, transform_indices = @transform_5, window_bounds = array<i64: 768, 128>}, {pipeline_mode = #tpu.pipeline_mode<synchronous>, transform_indices = @transform_6, window_bounds = array<i64: 1, 128>}, {transform_indices = @transform_7, window_bounds = array<i64: 128, 128>}]} {
    %c0 = arith.constant 0 : index
    %c0_0 = arith.constant 0 : index
    %0 = vector.load %arg1[%c0, %c0_0] : memref<128x128xbf16, #tpu.memory_space<vmem>>, vector<128x128xbf16>
    %c0_1 = arith.constant 0 : index
    %c0_2 = arith.constant 0 : index
    %1 = vector.load %arg2[%c0_1, %c0_2] : memref<128x512xbf16, #tpu.memory_space<vmem>>, vector<128x512xbf16>
    %cst = arith.constant dense<0.000000e+00> : vector<128x512xf32>
    %2 = tpu.matmul %0, %1, %cst {dimension_numbers = #tpu.dot_dimension_numbers<[1], [0], [0], [1], [0, 0, 1, 1], [], []>} : vector<128x128xbf16>, vector<128x512xbf16>, vector<128x512xf32> -> vector<128x512xf32>
    %c0_3 = arith.constant 0 : index
    %c0_4 = arith.constant 0 : index
    %3 = vector.load %arg3[%c0_3, %c0_4] : memref<1x512xf32, #tpu.memory_space<vmem>>, vector<1x512xf32>
    %4 = vector.broadcast %3 : vector<1x512xf32> to vector<128x512xf32>
    %5 = arith.addf %2, %4 : vector<128x512xf32>
    %cst_5 = arith.constant 0.000000e+00 : f32
    %6 = vector.broadcast %cst_5 : f32 to vector<128x512xf32>
    %7 = arith.maximumf %5, %6 : vector<128x512xf32>
    %8 = arith.truncf %7 : vector<128x512xf32> to vector<128x512xbf16>
    %c0_6 = arith.constant 0 : index
    %c0_7 = arith.constant 0 : index
    %9 = vector.load %arg4[%c0_6, %c0_7] : memref<512x768xbf16, #tpu.memory_space<vmem>>, vector<512x768xbf16>
    %cst_8 = arith.constant dense<0.000000e+00> : vector<128x768xf32>
    %10 = tpu.matmul %8, %9, %cst_8 {dimension_numbers = #tpu.dot_dimension_numbers<[1], [0], [0], [1], [0, 0, 1, 1], [], []>} : vector<128x512xbf16>, vector<512x768xbf16>, vector<128x768xf32> -> vector<128x768xf32>
    %c0_9 = arith.constant 0 : index
    %c0_10 = arith.constant 0 : index
    %11 = vector.load %arg5[%c0_9, %c0_10] : memref<1x768xf32, #tpu.memory_space<vmem>>, vector<1x768xf32>
    %12 = vector.broadcast %11 : vector<1x768xf32> to vector<128x768xf32>
    %13 = arith.addf %10, %12 : vector<128x768xf32>
    %cst_11 = arith.constant 0.000000e+00 : f32
    %14 = vector.broadcast %cst_11 : f32 to vector<128x768xf32>
    %15 = arith.maximumf %13, %14 : vector<128x768xf32>
    %16 = arith.truncf %15 : vector<128x768xf32> to vector<128x768xbf16>
    %c0_12 = arith.constant 0 : index
    %c0_13 = arith.constant 0 : index
    %17 = vector.load %arg6[%c0_12, %c0_13] : memref<768x128xbf16, #tpu.memory_space<vmem>>, vector<768x128xbf16>
    %cst_14 = arith.constant dense<0.000000e+00> : vector<128x128xf32>
    %18 = tpu.matmul %16, %17, %cst_14 {dimension_numbers = #tpu.dot_dimension_numbers<[1], [0], [0], [1], [0, 0, 1, 1], [], []>} : vector<128x768xbf16>, vector<768x128xbf16>, vector<128x128xf32> -> vector<128x128xf32>
    %c0_15 = arith.constant 0 : index
    %c0_16 = arith.constant 0 : index
    %19 = vector.load %arg7[%c0_15, %c0_16] : memref<1x128xf32, #tpu.memory_space<vmem>>, vector<1x128xf32>
    %20 = vector.broadcast %19 : vector<1x128xf32> to vector<128x128xf32>
    %21 = arith.addf %18, %20 : vector<128x128xf32>
    %c0_17 = arith.constant 0 : index
    %c0_18 = arith.constant 0 : index
    %22 = vector.load %arg8[%c0_17, %c0_18] : memref<128x128xf32, #tpu.memory_space<vmem>>, vector<128x128xf32>
    tpu.vector_store %arg8[%c0_17, %c0_18], %21 {strides = array<i32>} : memref<128x128xf32, #tpu.memory_space<vmem>>, vector<128x128xf32>,
    return
  }
  func.func @transform_0(%arg0: i32) -> (i32, i32) {
    %c0_i32 = arith.constant 0 : i32
    %c0_i32_0 = arith.constant 0 : i32
    return %arg0, %c0_i32 : i32, i32
  }
  func.func @transform_1(%arg0: i32) -> (i32, i32) {
    %c0_i32 = arith.constant 0 : i32
    %c0_i32_0 = arith.constant 0 : i32
    %c0_i32_1 = arith.constant 0 : i32
    return %c0_i32, %c0_i32_0 : i32, i32
  }
  func.func @transform_2(%arg0: i32) -> (i32, i32) {
    %c0_i32 = arith.constant 0 : i32
    %c0_i32_0 = arith.constant 0 : i32
    %c0_i32_1 = arith.constant 0 : i32
    return %c0_i32, %c0_i32_0 : i32, i32
  }
  func.func @transform_3(%arg0: i32) -> (i32, i32) {
    %c0_i32 = arith.constant 0 : i32
    %c0_i32_0 = arith.constant 0 : i32
    %c0_i32_1 = arith.constant 0 : i32
    return %c0_i32, %c0_i32_0 : i32, i32
  }
  func.func @transform_4(%arg0: i32) -> (i32, i32) {
    %c0_i32 = arith.constant 0 : i32
    %c0_i32_0 = arith.constant 0 : i32
    %c0_i32_1 = arith.constant 0 : i32
    return %c0_i32, %c0_i32_0 : i32, i32
  }
  func.func @transform_5(%arg0: i32) -> (i32, i32) {
    %c0_i32 = arith.constant 0 : i32
    %c0_i32_0 = arith.constant 0 : i32
    %c0_i32_1 = arith.constant 0 : i32
    return %c0_i32, %c0_i32_0 : i32, i32
  }
  func.func @transform_6(%arg0: i32) -> (i32, i32) {
    %c0_i32 = arith.constant 0 : i32
    %c0_i32_0 = arith.constant 0 : i32
    %c0_i32_1 = arith.constant 0 : i32
    return %c0_i32, %c0_i32_0 : i32, i32
  }
  func.func @transform_7(%arg0: i32) -> (i32, i32) {
    %c0_i32 = arith.constant 0 : i32
    %c0_i32_0 = arith.constant 0 : i32
    return %arg0, %c0_i32 : i32, i32
  }
}

</mosaic_0001>

<llo_original>
// kernel: tpu_custom_call.1
$region0: #{tpu_custom_call.1}
  #allocation0 [shape = 'u32[]', space=smem, size = 0x4, offset = 0x4, fixed_abs, tag = 'smem constant byte address 0x4 - core index']
  #allocation1 [shape = 'u32[144,128]{1,0:T(1,128)}', space=vmem, size = 0x12000, scoped, tag = 'internal scratch']
  %s0 = inlined_call_operand.hbm [shape: bf16[128,128], index: 0, kind: input, shape index: {}]
  %s1 = inlined_call_operand.hbm [shape: bf16[128,512], index: 1, kind: input, shape index: {}]
  %s2 = inlined_call_operand.vmem [shape: f32[1,512], index: 2, kind: input, shape index: {}]
  %s3 = inlined_call_operand.hbm [shape: bf16[512,768], index: 3, kind: input, shape index: {}]
  %s4 = inlined_call_operand.vmem [shape: f32[1,768], index: 4, kind: input, shape index: {}]
  %s5 = inlined_call_operand.hbm [shape: bf16[768,128], index: 5, kind: input, shape index: {}]
  %s6 = inlined_call_operand.vmem [shape: f32[1,128], index: 6, kind: input, shape index: {}]
  %s7 = inlined_call_operand.hbm [shape: f32[128,128], index: 7, kind: output, shape index: {}]
  %s8 = sld [smem:[#allocation0]]
  $region54: #{tpu_custom_call.1} parent=0
    _
  %s10 = ssub.s32 1, %s8
  %s11 = scalar_select 0, %s10, %s8
  $region1: #{tpu_custom_call.1} parent=0
    #allocation2 [shape = 'u8[32768]{0}', space=vmem, size = 0x8000, scoped, tag = 'input window, operand 0, single buffered']
    #allocation3 [shape = 's32[1]{0}', space=sflag, size = 0x4, scoped, tag = 'scoped memory for tpu_custom_call.1']
    #allocation4 [shape = 's32[1]{0}', space=sflag, size = 0x4, scoped, tag = 'scoped memory for tpu_custom_call.1']
    #allocation5 [shape = 'u8[131072]{0}', space=vmem, size = 0x20000, scoped, tag = 'input window, operand 1, single buffered']
    #allocation6 [shape = 's32[1]{0}', space=sflag, size = 0x4, scoped, tag = 'scoped memory for tpu_custom_call.1']
    #allocation7 [shape = 'u8[786432]{0}', space=vmem, size = 0xc0000, scoped, tag = 'input window, operand 3, single buffered']
    #allocation8 [shape = 'u8[196608]{0}', space=vmem, size = 0x30000, scoped, tag = 'input window, operand 5, single buffered']
    #allocation9 [shape = 's32[1]{0}', space=sflag, size = 0x4, scoped, tag = 'scoped memory for tpu_custom_call.1']
    #allocation10 [shape = 'u8[65536]{0}', space=vmem, size = 0x10000, scoped, tag = 'output window, operand 0, single buffered']
    %12 = vsyncpa [#allocation3], 0
    %13 = vsyncpa [#allocation6], 0
    %14 = vsyncpa [#allocation9], 0
    %15 = vsyncpa [#allocation4], 0
    // Predicated region
    $region2: #{tpu_custom_call.1} parent=1 // pred_check
      _
    $region3: #{tpu_custom_call.1} parent=1 // pred_check_branch
      %17 = sbr.rel (0) target = $region5
    $region4: #{tpu_custom_call.1} parent=1 // pred_region
      %s19 = ssub.s32 1024, 1024
      %20 = vsyncadd [#allocation3], %s19
      %s21 = sshll.u32 [#allocation2], 4
      %s22 = int_to_ptr.vmem [resolvable:$true] %s21
      %27 = dma.hbm_to_vmem [thread:$0]  %s0, 1024, %s22, [#allocation3], 64, 64, 4
    $region5: #{tpu_custom_call.1} parent=1 // pred_fallthru
      _
    // Predicated region
    $region6: #{tpu_custom_call.1} parent=1 // pred_check
      _
    $region7: #{tpu_custom_call.1} parent=1 // pred_check_branch
      %29 = sbr.rel (0) target = $region9
    $region8: #{tpu_custom_call.1} parent=1 // pred_region
      %s31 = ssub.s32 4096, 4096
      %32 = vsyncadd [#allocation6], %s31
      %s33 = sshll.u32 [#allocation5], 4
      %s34 = int_to_ptr.vmem [resolvable:$true] %s33
      %39 = dma.hbm_to_vmem [thread:$0]  %s1, 4096, %s34, [#allocation6], 256, 256, 16
    $region9: #{tpu_custom_call.1} parent=1 // pred_fallthru
      _
    // Predicated region
    $region10: #{tpu_custom_call.1} parent=1 // pred_check
      _
    $region11: #{tpu_custom_call.1} parent=1 // pred_check_branch
      %41 = sbr.rel (0) target = $region13
    $region12: #{tpu_custom_call.1} parent=1 // pred_region
      _
    $region13: #{tpu_custom_call.1} parent=1 // pred_fallthru
      _
    // Predicated region
    $region14: #{tpu_custom_call.1} parent=1 // pred_check
      _
    $region15: #{tpu_custom_call.1} parent=1 // pred_check_branch
      %43 = sbr.rel (0) target = $region17
    $region16: #{tpu_custom_call.1} parent=1 // pred_region
      %s45 = ssub.s32 24576, 24576
      %46 = vsyncadd [#allocation6], %s45
      %s47 = sshll.u32 [#allocation7], 4
      %s48 = int_to_ptr.vmem [resolvable:$true] %s47
      %53 = dma.hbm_to_vmem [thread:$0]  %s3, 24576, %s48, [#allocation6], 384, 384, 24
    $region17: #{tpu_custom_call.1} parent=1 // pred_fallthru
      _
    // Predicated region
    $region18: #{tpu_custom_call.1} parent=1 // pred_check
      _
    $region19: #{tpu_custom_call.1} parent=1 // pred_check_branch
      %55 = sbr.rel (0) target = $region21
    $region20: #{tpu_custom_call.1} parent=1 // pred_region
      _
    $region21: #{tpu_custom_call.1} parent=1 // pred_fallthru
      _
    // Predicated region
    $region22: #{tpu_custom_call.1} parent=1 // pred_check
      _
    $region23: #{tpu_custom_call.1} parent=1 // pred_check_branch
      %57 = sbr.rel (0) target = $region25
    $region24: #{tpu_custom_call.1} parent=1 // pred_region
      %s59 = ssub.s32 6144, 6144
      %60 = vsyncadd [#allocation9], %s59
      %s61 = sshll.u32 [#allocation8], 4
      %s62 = int_to_ptr.vmem [resolvable:$true] %s61
      %67 = dma.hbm_to_vmem [thread:$0]  %s5, 6144, %s62, [#allocation9], 64, 64, 4
    $region25: #{tpu_custom_call.1} parent=1 // pred_fallthru
      _
    // Predicated region
    $region26: #{tpu_custom_call.1} parent=1 // pred_check
      _
    $region27: #{tpu_custom_call.1} parent=1 // pred_check_branch
      %69 = sbr.rel (0) target = $region29
    $region28: #{tpu_custom_call.1} parent=1 // pred_region
      _
    $region29: #{tpu_custom_call.1} parent=1 // pred_fallthru
      _
    // Predicated region
    $region30: #{tpu_custom_call.1} parent=1 // pred_check
      _
    $region31: #{tpu_custom_call.1} parent=1 // pred_check_branch
      %71 = sbr.rel (0) target = $region33
    $region32: #{tpu_custom_call.1} parent=1 // pred_region
      %72 = dma.done [#allocation3], 1024
    $region33: #{tpu_custom_call.1} parent=1 // pred_fallthru
      _
    // Predicated region
    $region34: #{tpu_custom_call.1} parent=1 // pred_check
      _
    $region35: #{tpu_custom_call.1} parent=1 // pred_check_branch
      %74 = sbr.rel (0) target = $region37
    $region36: #{tpu_custom_call.1} parent=1 // pred_region
      %75 = dma.done [#allocation6], 4096
    $region37: #{tpu_custom_call.1} parent=1 // pred_fallthru
      _
    // Predicated region
    $region38: #{tpu_custom_call.1} parent=1 // pred_check
      _
    $region39: #{tpu_custom_call.1} parent=1 // pred_check_branch
      %77 = sbr.rel (0) target = $region41
    $region40: #{tpu_custom_call.1} parent=1 // pred_region
      %78 = dma.done [#allocation6], 24576
    $region41: #{tpu_custom_call.1} parent=1 // pred_fallthru
      _
    // Predicated region
    $region42: #{tpu_custom_call.1} parent=1 // pred_check
      _
    $region43: #{tpu_custom_call.1} parent=1 // pred_check_branch
      %80 = sbr.rel (0) target = $region45
    $region44: #{tpu_custom_call.1} parent=1 // pred_region
      %81 = dma.done [#allocation9], 6144
    $region45: #{tpu_custom_call.1} parent=1 // pred_fallthru
      _
    %v83 = vld [vmem:[#allocation2] sm:$0xf]
    %v84 = vld [vmem:[#allocation2 + $0x4] sm:$0xf]
    %v85 = vld [vmem:[#allocation2 + $0x8] sm:$0xf]
    %v86 = vld [vmem:[#allocation2 + $0xc] sm:$0xf]
    %v87 = vld [vmem:[#allocation2 + $0x10] sm:$0xf]
    %v88 = vld [vmem:[#allocation2 + $0x14] sm:$0xf]
    %v89 = vld [vmem:[#allocation2 + $0x18] sm:$0xf]
    %v90 = vld [vmem:[#allocation2 + $0x1c] sm:$0xf]
    %v91 = vld [vmem:[#allocation2 + $0x20] sm:$0xf]
    %v92 = vld [vmem:[#allocation2 + $0x24] sm:$0xf]
    %v93 = vld [vmem:[#allocation2 + $0x28] sm:$0xf]
    %v94 = vld [vmem:[#allocation2 + $0x2c] sm:$0xf]
    %v95 = vld [vmem:[#allocation2 + $0x30] sm:$0xf]
    %v96 = vld [vmem:[#allocation2 + $0x34] sm:$0xf]
    %v97 = vld [vmem:[#allocation2 + $0x38] sm:$0xf]
    %v98 = vld [vmem:[#allocation2 + $0x3c] sm:$0xf]
    %v99 = vld [vmem:[#allocation5] sm:$0xff]
    %v100 = vld [vmem:[#allocation5 + $0x8] sm:$0xff]
    %v101 = vld [vmem:[#allocation5 + $0x10] sm:$0xff]
    %v102 = vld [vmem:[#allocation5 + $0x18] sm:$0xff]
    %v103 = vld [vmem:[#allocation5 + $0x20] sm:$0xff]
    %v104 = vld [vmem:[#allocation5 + $0x28] sm:$0xff]
    %v105 = vld [vmem:[#allocation5 + $0x30] sm:$0xff]
    %v106 = vld [vmem:[#allocation5 + $0x38] sm:$0xff]
    %v107 = vld [vmem:[#allocation5 + $0x40] sm:$0xff]
    %v108 = vld [vmem:[#allocation5 + $0x48] sm:$0xff]
    %v109 = vld [vmem:[#allocation5 + $0x50] sm:$0xff]
    %v110 = vld [vmem:[#allocation5 + $0x58] sm:$0xff]
    %v111 = vld [vmem:[#allocation5 + $0x60] sm:$0xff]
    %v112 = vld [vmem:[#allocation5 + $0x68] sm:$0xff]
    %v113 = vld [vmem:[#allocation5 + $0x70] sm:$0xff]
    %v114 = vld [vmem:[#allocation5 + $0x78] sm:$0xff]
    %v115 = vld [vmem:[#allocation5 + $0x80] sm:$0xff]
    %v116 = vld [vmem:[#allocation5 + $0x88] sm:$0xff]
    %v117 = vld [vmem:[#allocation5 + $0x90] sm:$0xff]
    %v118 = vld [vmem:[#allocation5 + $0x98] sm:$0xff]
    %v119 = vld [vmem:[#allocation5 + $0xa0] sm:$0xff]
    %v120 = vld [vmem:[#allocation5 + $0xa8] sm:$0xff]
    %v121 = vld [vmem:[#allocation5 + $0xb0] sm:$0xff]
    %v122 = vld [vmem:[#allocation5 + $0xb8] sm:$0xff]
    %v123 = vld [vmem:[#allocation5 + $0xc0] sm:$0xff]
    %v124 = vld [vmem:[#allocation5 + $0xc8] sm:$0xff]
    %v125 = vld [vmem:[#allocation5 + $0xd0] sm:$0xff]
    %v126 = vld [vmem:[#allocation5 + $0xd8] sm:$0xff]
    %v127 = vld [vmem:[#allocation5 + $0xe0] sm:$0xff]
    %v128 = vld [vmem:[#allocation5 + $0xe8] sm:$0xff]
    %v129 = vld [vmem:[#allocation5 + $0xf0] sm:$0xff]
    %v130 = vld [vmem:[#allocation5 + $0xf8] sm:$0xff]
    %v131 = vld [vmem:[%s2] sm:$0xf]
    %v133 = vlaneseq
    %v134 = vshrl.u32 %v133, 7
    %v135 = vsub.s32 0, %v134
    %v136 = vrot.slane %v131, %v135
    %v137 = vlaneseq
    %v138 = vshrl.u32 %v137, 7
    %v139 = vsub.s32 1, %v138
    %v140 = vrot.slane %v131, %v139
    %v141 = vlaneseq
    %v142 = vshrl.u32 %v141, 7
    %v143 = vsub.s32 2, %v142
    %v144 = vrot.slane %v131, %v143
    %v145 = vlaneseq
    %v146 = vshrl.u32 %v145, 7
    %v147 = vsub.s32 3, %v146
    %v148 = vrot.slane %v131, %v147
    %v169 = vunpack.c.l.b16 %v83
    %v170 = vunpack.c.l.b16 %v84
    %v171 = vunpack.c.l.b16 %v85
    %v172 = vunpack.c.l.b16 %v86
    %v173 = vunpack.c.l.b16 %v87
    %v174 = vunpack.c.l.b16 %v88
    %v175 = vunpack.c.l.b16 %v89
    %v176 = vunpack.c.l.b16 %v90
    %v177 = vunpack.c.l.b16 %v91
    %v178 = vunpack.c.l.b16 %v92
    %v179 = vunpack.c.l.b16 %v93
    %v180 = vunpack.c.l.b16 %v94
    %v181 = vunpack.c.l.b16 %v95
    %v182 = vunpack.c.l.b16 %v96
    %v183 = vunpack.c.l.b16 %v97
    %v184 = vunpack.c.l.b16 %v98
    %v185 = vpack.c.b16 %v170, %v169
    %v186 = vpack.c.b16 %v172, %v171
    %v187 = vpack.c.b16 %v174, %v173
    %v188 = vpack.c.b16 %v176, %v175
    %v189 = vpack.c.b16 %v178, %v177
    %v190 = vpack.c.b16 %v180, %v179
    %v191 = vpack.c.b16 %v182, %v181
    %v192 = vpack.c.b16 %v184, %v183
    %v233 = vunpack.c.l.b16 %v99
    %v234 = vunpack.c.h.b16 %v99
    %v235 = vunpack.c.l.b16 %v100
    %v236 = vunpack.c.h.b16 %v100
    %v237 = vunpack.c.l.b16 %v101
    %v238 = vunpack.c.h.b16 %v101
    %v239 = vunpack.c.l.b16 %v102
    %v240 = vunpack.c.h.b16 %v102
    %v241 = vunpack.c.l.b16 %v103
    %v242 = vunpack.c.h.b16 %v103
    %v243 = vunpack.c.l.b16 %v104
    %v244 = vunpack.c.h.b16 %v104
    %v245 = vunpack.c.l.b16 %v105
    %v246 = vunpack.c.h.b16 %v105
    %v247 = vunpack.c.l.b16 %v106
    %v248 = vunpack.c.h.b16 %v106
    %v249 = vunpack.c.l.b16 %v107
    %v250 = vunpack.c.h.b16 %v107
    %v251 = vunpack.c.l.b16 %v108
    %v252 = vunpack.c.h.b16 %v108
    %v253 = vunpack.c.l.b16 %v109
    %v254 = vunpack.c.h.b16 %v109
    %v255 = vunpack.c.l.b16 %v110
    %v256 = vunpack.c.h.b16 %v110
    %v257 = vunpack.c.l.b16 %v111
    %v258 = vunpack.c.h.b16 %v111
    %v259 = vunpack.c.l.b16 %v112
    %v260 = vunpack.c.h.b16 %v112
    %v261 = vunpack.c.l.b16 %v113
    %v262 = vunpack.c.h.b16 %v113
    %v263 = vunpack.c.l.b16 %v114
    %v264 = vunpack.c.h.b16 %v114
    %v265 = vunpack.c.l.b16 %v115
    %v266 = vunpack.c.h.b16 %v115
    %v267 = vunpack.c.l.b16 %v116
    %v268 = vunpack.c.h.b16 %v116
    %v269 = vunpack.c.l.b16 %v117
    %v270 = vunpack.c.h.b16 %v117
    %v271 = vunpack.c.l.b16 %v118
    %v272 = vunpack.c.h.b16 %v118
    %v273 = vunpack.c.l.b16 %v119
    %v274 = vunpack.c.h.b16 %v119
    %v275 = vunpack.c.l.b16 %v120
    %v276 = vunpack.c.h.b16 %v120
    %v277 = vunpack.c.l.b16 %v121
    %v278 = vunpack.c.h.b16 %v121
    %v279 = vunpack.c.l.b16 %v122
    %v280 = vunpack.c.h.b16 %v122
    %v281 = vunpack.c.l.b16 %v123
    %v282 = vunpack.c.h.b16 %v123
    %v283 = vunpack.c.l.b16 %v124
    %v284 = vunpack.c.h.b16 %v124
    %v285 = vunpack.c.l.b16 %v125
    %v286 = vunpack.c.h.b16 %v125
    %v287 = vunpack.c.l.b16 %v126
    %v288 = vunpack.c.h.b16 %v126
    %v289 = vunpack.c.l.b16 %v127
    %v290 = vunpack.c.h.b16 %v127
    %v291 = vunpack.c.l.b16 %v128
    %v292 = vunpack.c.h.b16 %v128
    %v293 = vunpack.c.l.b16 %v129
    %v294 = vunpack.c.h.b16 %v129
    %v295 = vunpack.c.l.b16 %v130
    %v296 = vunpack.c.h.b16 %v130
    %v297 = vpack.c.b16 %v237, %v233
    %v298 = vpack.c.b16 %v238, %v234
    %v299 = vpack.c.b16 %v239, %v235
    %v300 = vpack.c.b16 %v240, %v236
    %v301 = vpack.c.b16 %v245, %v241
    %v302 = vpack.c.b16 %v246, %v242
    %v303 = vpack.c.b16 %v247, %v243
    %v304 = vpack.c.b16 %v248, %v244
    %v305 = vpack.c.b16 %v253, %v249
    %v306 = vpack.c.b16 %v254, %v250
    %v307 = vpack.c.b16 %v255, %v251
    %v308 = vpack.c.b16 %v256, %v252
    %v309 = vpack.c.b16 %v261, %v257
    %v310 = vpack.c.b16 %v262, %v258
    %v311 = vpack.c.b16 %v263, %v259
    %v312 = vpack.c.b16 %v264, %v260
    %v313 = vpack.c.b16 %v269, %v265
    %v314 = vpack.c.b16 %v270, %v266
    %v315 = vpack.c.b16 %v271, %v267
    %v316 = vpack.c.b16 %v272, %v268
    %v317 = vpack.c.b16 %v277, %v273
    %v318 = vpack.c.b16 %v278, %v274
    %v319 = vpack.c.b16 %v279, %v275
    %v320 = vpack.c.b16 %v280, %v276
    %v321 = vpack.c.b16 %v285, %v281
    %v322 = vpack.c.b16 %v286, %v282
    %v323 = vpack.c.b16 %v287, %v283
    %v324 = vpack.c.b16 %v288, %v284
    %v325 = vpack.c.b16 %v293, %v289
    %v326 = vpack.c.b16 %v294, %v290
    %v327 = vpack.c.b16 %v295, %v291
    %v328 = vpack.c.b16 %v296, %v292
    %361 = vmatprep.subr.bf16.mxu0 %v298
    %362 = vmatpush1.bf16.msra.mxu0 %v297
    %363 = vmatprep.subr.bf16.mxu0 %v302
    %364 = vmatpush1.bf16.msra.mxu0 %v301
    %365 = vmatprep.subr.bf16.mxu0 %v306
    %366 = vmatpush1.bf16.msra.mxu0 %v305
    %367 = vmatprep.subr.bf16.mxu0 %v310
    %368 = vmatpush1.bf16.msra.mxu0 %v309
    %369 = vmatprep.subr.bf16.mxu0 %v314
    %370 = vmatpush1.bf16.msra.mxu0 %v313
    %371 = vmatprep.subr.bf16.mxu0 %v318
    %372 = vmatpush1.bf16.msra.mxu0 %v317
    %373 = vmatprep.subr.bf16.mxu0 %v322
    %374 = vmatpush1.bf16.msra.mxu0 %v321
    %375 = vmatprep.subr.bf16.mxu0 %v326
    %376 = vmatpush1.bf16.msra.mxu0 %v325
    %377 = vmatprep.subr.bf16.mxu0 0
    %378 = vmatpush1.bf16.msra.mxu0 0
    %379 = vmatprep.subr.bf16.mxu0 0
    %380 = vmatpush1.bf16.msra.mxu0 0
    %381 = vmatprep.subr.bf16.mxu0 0
    %382 = vmatpush1.bf16.msra.mxu0 0
    %383 = vmatprep.subr.bf16.mxu0 0
    %384 = vmatpush1.bf16.msra.mxu0 0
    %385 = vmatprep.subr.bf16.mxu0 0
    %386 = vmatpush1.bf16.msra.mxu0 0
    %387 = vmatprep.subr.bf16.mxu0 0
    %388 = vmatpush1.bf16.msra.mxu0 0
    %389 = vmatprep.subr.bf16.mxu0 0
    %390 = vmatpush1.bf16.msra.mxu0 0
    %391 = vmatprep.subr.bf16.mxu0 0
    %392 = vmatpush1.bf16.msra.mxu0 0
    %393 = vmatprep.mubr.bf16.mxu0 0
    %394 = vmatmul.mubr.bf16.gmra.mrb[0].mxu0 %v185
    %v395 = vpop.f32.mrb[0].mxu0
    %v396 = vadd.f32 %v136, %v395
    %v397 = vpop.f32.mrb[0].mxu0
    %v398 = vadd.f32 %v140, %v397
    %v399 = vpop.f32.mrb[0].mxu0
    %v400 = vadd.f32 %v136, %v399
    %v401 = vpop.f32.mrb[0].mxu0
    %v402 = vadd.f32 %v140, %v401
    %403 = vmatprep.mubr.bf16.mxu0 0
    %404 = vmatmul.mubr.bf16.gmra.mrb[0].mxu0 %v186
    %v405 = vpop.f32.mrb[0].mxu0
    %v406 = vadd.f32 %v136, %v405
    %v407 = vpop.f32.mrb[0].mxu0
    %v408 = vadd.f32 %v140, %v407
    %v409 = vpop.f32.mrb[0].mxu0
    %v410 = vadd.f32 %v136, %v409
    %v411 = vpop.f32.mrb[0].mxu0
    %v412 = vadd.f32 %v140, %v411
    %413 = vmatprep.mubr.bf16.mxu0 0
    %414 = vmatmul.mubr.bf16.gmra.mrb[0].mxu0 %v187
    %v415 = vpop.f32.mrb[0].mxu0
    %v416 = vadd.f32 %v136, %v415
    %v417 = vpop.f32.mrb[0].mxu0
    %v418 = vadd.f32 %v140, %v417
    %v419 = vpop.f32.mrb[0].mxu0
    %v420 = vadd.f32 %v136, %v419
    %v421 = vpop.f32.mrb[0].mxu0
    %v422 = vadd.f32 %v140, %v421
    %423 = vmatprep.mubr.bf16.mxu0 0
    %424 = vmatmul.mubr.bf16.gmra.mrb[0].mxu0 %v188
    %v425 = vpop.f32.mrb[0].mxu0
    %v426 = vadd.f32 %v136, %v425
    %v427 = vpop.f32.mrb[0].mxu0
    %v428 = vadd.f32 %v140, %v427
    %v429 = vpop.f32.mrb[0].mxu0
    %v430 = vadd.f32 %v136, %v429
    %v431 = vpop.f32.mrb[0].mxu0
    %v432 = vadd.f32 %v140, %v431
    %433 = vmatprep.mubr.bf16.mxu0 0
    %434 = vmatmul.mubr.bf16.gmra.mrb[0].mxu0 %v189
    %v435 = vpop.f32.mrb[0].mxu0
    %v436 = vadd.f32 %v136, %v435
    %v437 = vpop.f32.mrb[0].mxu0
    %v438 = vadd.f32 %v140, %v437
    %v439 = vpop.f32.mrb[0].mxu0
    %v440 = vadd.f32 %v136, %v439
    %v441 = vpop.f32.mrb[0].mxu0
    %v442 = vadd.f32 %v140, %v441
    %443 = vmatprep.mubr.bf16.mxu0 0
    %444 = vmatmul.mubr.bf16.gmra.mrb[0].mxu0 %v190
    %v445 = vpop.f32.mrb[0].mxu0
    %v446 = vadd.f32 %v136, %v445
    %v447 = vpop.f32.mrb[0].mxu0
    %v448 = vadd.f32 %v140, %v447
    %v449 = vpop.f32.mrb[0].mxu0
    %v450 = vadd.f32 %v136, %v449
    %v451 = vpop.f32.mrb[0].mxu0
    %v452 = vadd.f32 %v140, %v451
    %453 = vmatprep.mubr.bf16.mxu0 0
    %454 = vmatmul.mubr.bf16.gmra.mrb[0].mxu0 %v191
    %v455 = vpop.f32.mrb[0].mxu0
    %v456 = vadd.f32 %v136, %v455
    %v457 = vpop.f32.mrb[0].mxu0
    %v458 = vadd.f32 %v140, %v457
    %v459 = vpop.f32.mrb[0].mxu0
    %v460 = vadd.f32 %v136, %v459
    %v461 = vpop.f32.mrb[0].mxu0
    %v462 = vadd.f32 %v140, %v461
    %463 = vmatprep.mubr.bf16.mxu0 0
    %464 = vmatmul.mubr.bf16.gmra.mrb[0].mxu0 %v192
    %v465 = vpop.f32.mrb[0].mxu0
    %v466 = vadd.f32 %v136, %v465
    %v467 = vpop.f32.mrb[0].mxu0
    %v468 = vadd.f32 %v140, %v467
    %v469 = vpop.f32.mrb[0].mxu0
    %v470 = vadd.f32 %v136, %v469
    %v471 = vpop.f32.mrb[0].mxu0
    %v472 = vadd.f32 %v140, %v471
    %473 = vdwg.mxu0
    %474 = vmatprep.subr.bf16.mxu0 %v300
    %475 = vmatpush1.bf16.msra.mxu0 %v299
    %476 = vmatprep.subr.bf16.mxu0 %v304
    %477 = vmatpush1.bf16.msra.mxu0 %v303
    %478 = vmatprep.subr.bf16.mxu0 %v308
    %479 = vmatpush1.bf16.msra.mxu0 %v307
    %480 = vmatprep.subr.bf16.mxu0 %v312
    %481 = vmatpush1.bf16.msra.mxu0 %v311
    %482 = vmatprep.subr.bf16.mxu0 %v316
    %483 = vmatpush1.bf16.msra.mxu0 %v315
    %484 = vmatprep.subr.bf16.mxu0 %v320
    %485 = vmatpush1.bf16.msra.mxu0 %v319
    %486 = vmatprep.subr.bf16.mxu0 %v324
    %487 = vmatpush1.bf16.msra.mxu0 %v323
    %488 = vmatprep.subr.bf16.mxu0 %v328
    %489 = vmatpush1.bf16.msra.mxu0 %v327
    %490 = vmatprep.subr.bf16.mxu0 0
    %491 = vmatpush1.bf16.msra.mxu0 0
    %492 = vmatprep.subr.bf16.mxu0 0
    %493 = vmatpush1.bf16.msra.mxu0 0
    %494 = vmatprep.subr.bf16.mxu0 0
    %495 = vmatpush1.bf16.msra.mxu0 0
    %496 = vmatprep.subr.bf16.mxu0 0
    %497 = vmatpush1.bf16.msra.mxu0 0
    %498 = vmatprep.subr.bf16.mxu0 0
    %499 = vmatpush1.bf16.msra.mxu0 0
    %500 = vmatprep.subr.bf16.mxu0 0
    %501 = vmatpush1.bf16.msra.mxu0 0
    %502 = vmatprep.subr.bf16.mxu0 0
    %503 = vmatpush1.bf16.msra.mxu0 0
    %504 = vmatprep.subr.bf16.mxu0 0
    %505 = vmatpush1.bf16.msra.mxu0 0
    %506 = vmatprep.mubr.bf16.mxu0 0
    %507 = vmatmul.mubr.bf16.gmra.mrb[0].mxu0 %v185
    %v508 = vpop.f32.mrb[0].mxu0
    %v509 = vadd.f32 %v144, %v508
    %v510 = vpop.f32.mrb[0].mxu0
    %v511 = vadd.f32 %v148, %v510
    %v512 = vpop.f32.mrb[0].mxu0
    %v513 = vadd.f32 %v144, %v512
    %v514 = vpop.f32.mrb[0].mxu0
    %v515 = vadd.f32 %v148, %v514
    %516 = vmatprep.mubr.bf16.mxu0 0
    %517 = vmatmul.mubr.bf16.gmra.mrb[0].mxu0 %v186
    %v518 = vpop.f32.mrb[0].mxu0
    %v519 = vadd.f32 %v144, %v518
    %v520 = vpop.f32.mrb[0].mxu0
    %v521 = vadd.f32 %v148, %v520
    %v522 = vpop.f32.mrb[0].mxu0
    %v523 = vadd.f32 %v144, %v522
    %v524 = vpop.f32.mrb[0].mxu0
    %v525 = vadd.f32 %v148, %v524
    %526 = vmatprep.mubr.bf16.mxu0 0
    %527 = vmatmul.mubr.bf16.gmra.mrb[0].mxu0 %v187
    %v528 = vpop.f32.mrb[0].mxu0
    %v529 = vadd.f32 %v144, %v528
    %v530 = vpop.f32.mrb[0].mxu0
    %v531 = vadd.f32 %v148, %v530
    %v532 = vpop.f32.mrb[0].mxu0
    %v533 = vadd.f32 %v144, %v532
    %v534 = vpop.f32.mrb[0].mxu0
    %v535 = vadd.f32 %v148, %v534
    %536 = vmatprep.mubr.bf16.mxu0 0
    %537 = vmatmul.mubr.bf16.gmra.mrb[0].mxu0 %v188
    %v538 = vpop.f32.mrb[0].mxu0
    %v539 = vadd.f32 %v144, %v538
    %v540 = vpop.f32.mrb[0].mxu0
    %v541 = vadd.f32 %v148, %v540
    %v542 = vpop.f32.mrb[0].mxu0
    %v543 = vadd.f32 %v144, %v542
    %v544 = vpop.f32.mrb[0].mxu0
    %v545 = vadd.f32 %v148, %v544
    %546 = vmatprep.mubr.bf16.mxu0 0
    %547 = vmatmul.mubr.bf16.gmra.mrb[0].mxu0 %v189
    %v548 = vpop.f32.mrb[0].mxu0
    %v549 = vadd.f32 %v144, %v548
    %v550 = vpop.f32.mrb[0].mxu0
    %v551 = vadd.f32 %v148, %v550
    %v552 = vpop.f32.mrb[0].mxu0
    %v553 = vadd.f32 %v144, %v552
    %v554 = vpop.f32.mrb[0].mxu0
    %v555 = vadd.f32 %v148, %v554
    %556 = vmatprep.mubr.bf16.mxu0 0
    %557 = vmatmul.mubr.bf16.gmra.mrb[0].mxu0 %v190
    %v558 = vpop.f32.mrb[0].mxu0
    %v559 = vadd.f32 %v144, %v558
    %v560 = vpop.f32.mrb[0].mxu0
    %v561 = vadd.f32 %v148, %v560
    %v562 = vpop.f32.mrb[0].mxu0
    %v563 = vadd.f32 %v144, %v562
    %v564 = vpop.f32.mrb[0].mxu0
    %v565 = vadd.f32 %v148, %v564
    %566 = vmatprep.mubr.bf16.mxu0 0
    %567 = vmatmul.mubr.bf16.gmra.mrb[0].mxu0 %v191
    %v568 = vpop.f32.mrb[0].mxu0
    %v569 = vadd.f32 %v144, %v568
    %v570 = vpop.f32.mrb[0].mxu0
    %v571 = vadd.f32 %v148, %v570
    %v572 = vpop.f32.mrb[0].mxu0
    %v573 = vadd.f32 %v144, %v572
    %v574 = vpop.f32.mrb[0].mxu0
    %v575 = vadd.f32 %v148, %v574
    %576 = vmatprep.mubr.bf16.mxu0 0
    %577 = vmatmul.mubr.bf16.gmra.mrb[0].mxu0 %v192
    %v578 = vpop.f32.mrb[0].mxu0
    %v579 = vadd.f32 %v144, %v578
    %v580 = vpop.f32.mrb[0].mxu0
    %v581 = vadd.f32 %v148, %v580
    %v582 = vpop.f32.mrb[0].mxu0
    %v583 = vadd.f32 %v144, %v582
    %v584 = vpop.f32.mrb[0].mxu0
    %v585 = vadd.f32 %v148, %v584
    %586 = vdwg.mxu0
    %v587 = vmax.f32 %v396, 0.0
    %v588 = vmax.f32 %v398, 0.0
    %v589 = vmax.f32 %v509, 0.0
    %v590 = vmax.f32 %v511, 0.0
    %v591 = vmax.f32 %v400, 0.0
    %v592 = vmax.f32 %v402, 0.0
    %v593 = vmax.f32 %v513, 0.0
    %v594 = vmax.f32 %v515, 0.0
    %v595 = vmax.f32 %v406, 0.0
    %v596 = vmax.f32 %v408, 0.0
    %v597 = vmax.f32 %v519, 0.0
    %v598 = vmax.f32 %v521, 0.0
    %v599 = vmax.f32 %v410, 0.0
    %v600 = vmax.f32 %v412, 0.0
    %v601 = vmax.f32 %v523, 0.0
    %v602 = vmax.f32 %v525, 0.0
    %v603 = vmax.f32 %v416, 0.0
    %v604 = vmax.f32 %v418, 0.0
    %v605 = vmax.f32 %v529, 0.0
    %v606 = vmax.f32 %v531, 0.0
    %v607 = vmax.f32 %v420, 0.0
    %v608 = vmax.f32 %v422, 0.0
    %v609 = vmax.f32 %v533, 0.0
    %v610 = vmax.f32 %v535, 0.0
    %v611 = vmax.f32 %v426, 0.0
    %v612 = vmax.f32 %v428, 0.0
    %v613 = vmax.f32 %v539, 0.0
    %v614 = vmax.f32 %v541, 0.0
    %v615 = vmax.f32 %v430, 0.0
    %v616 = vmax.f32 %v432, 0.0
    %v617 = vmax.f32 %v543, 0.0
    %v618 = vmax.f32 %v545, 0.0
    %v619 = vmax.f32 %v436, 0.0
    %v620 = vmax.f32 %v438, 0.0
    %v621 = vmax.f32 %v549, 0.0
    %v622 = vmax.f32 %v551, 0.0
    %v623 = vmax.f32 %v440, 0.0
    %v624 = vmax.f32 %v442, 0.0
    %v625 = vmax.f32 %v553, 0.0
    %v626 = vmax.f32 %v555, 0.0
    %v627 = vmax.f32 %v446, 0.0
    %v628 = vmax.f32 %v448, 0.0
    %v629 = vmax.f32 %v559, 0.0
    %v630 = vmax.f32 %v561, 0.0
    %v631 = vmax.f32 %v450, 0.0
    %v632 = vmax.f32 %v452, 0.0
    %v633 = vmax.f32 %v563, 0.0
    %v634 = vmax.f32 %v565, 0.0
    %v635 = vmax.f32 %v456, 0.0
    %v636 = vmax.f32 %v458, 0.0
    %v637 = vmax.f32 %v569, 0.0
    %v638 = vmax.f32 %v571, 0.0
    %v639 = vmax.f32 %v460, 0.0
    %v640 = vmax.f32 %v462, 0.0
    %v641 = vmax.f32 %v573, 0.0
    %v642 = vmax.f32 %v575, 0.0
    %v643 = vmax.f32 %v466, 0.0
    %v644 = vmax.f32 %v468, 0.0
    %v645 = vmax.f32 %v579, 0.0
    %v646 = vmax.f32 %v581, 0.0
    %v647 = vmax.f32 %v470, 0.0
    %v648 = vmax.f32 %v472, 0.0
    %v649 = vmax.f32 %v583, 0.0
    %v650 = vmax.f32 %v585, 0.0
    %v651 = vpack.c.bf16 %v591, %v587
    %v652 = vpack.c.bf16 %v592, %v588
    %v653 = vpack.c.bf16 %v593, %v589
    %v654 = vpack.c.bf16 %v594, %v590
    %v655 = vpack.c.bf16 %v599, %v595
    %v656 = vpack.c.bf16 %v600, %v596
    %v657 = vpack.c.bf16 %v601, %v597
    %v658 = vpack.c.bf16 %v602, %v598
    %v659 = vpack.c.bf16 %v607, %v603
    %v660 = vpack.c.bf16 %v608, %v604
    %v661 = vpack.c.bf16 %v609, %v605
    %v662 = vpack.c.bf16 %v610, %v606
    %v663 = vpack.c.bf16 %v615, %v611
    %v664 = vpack.c.bf16 %v616, %v612
    %v665 = vpack.c.bf16 %v617, %v613
    %v666 = vpack.c.bf16 %v618, %v614
    %v667 = vpack.c.bf16 %v623, %v619
    %v668 = vpack.c.bf16 %v624, %v620
    %v669 = vpack.c.bf16 %v625, %v621
    %v670 = vpack.c.bf16 %v626, %v622
    %v671 = vpack.c.bf16 %v631, %v627
    %v672 = vpack.c.bf16 %v632, %v628
    %v673 = vpack.c.bf16 %v633, %v629
    %v674 = vpack.c.bf16 %v634, %v630
    %v675 = vpack.c.bf16 %v639, %v635
    %v676 = vpack.c.bf16 %v640, %v636
    %v677 = vpack.c.bf16 %v641, %v637
    %v678 = vpack.c.bf16 %v642, %v638
    %v679 = vpack.c.bf16 %v647, %v643
    %v680 = vpack.c.bf16 %v648, %v644
    %v681 = vpack.c.bf16 %v649, %v645
    %v682 = vpack.c.bf16 %v650, %v646
    %v683 = vld [vmem:[#allocation7] sm:$0xff]
    %v684 = vld [vmem:[#allocation7 + $0x8] sm:$0xff]
    %v685 = vld [vmem:[#allocation7 + $0x10] sm:$0xff]
    %v686 = vld [vmem:[#allocation7 + $0x18] sm:$0xff]
    %v687 = vld [vmem:[#allocation7 + $0x20] sm:$0xff]
    %v688 = vld [vmem:[#allocation7 + $0x28] sm:$0xff]
    %v689 = vld [vmem:[#allocation7 + $0x30] sm:$0xff]
    %v690 = vld [vmem:[#allocation7 + $0x38] sm:$0xff]
    %v691 = vld [vmem:[#allocation7 + $0x40] sm:$0xff]
    %v692 = vld [vmem:[#allocation7 + $0x48] sm:$0xff]
    %v693 = vld [vmem:[#allocation7 + $0x50] sm:$0xff]
    %v694 = vld [vmem:[#allocation7 + $0x58] sm:$0xff]
    %v695 = vld [vmem:[#allocation7 + $0x60] sm:$0xff]
    %v696 = vld [vmem:[#allocation7 + $0x68] sm:$0xff]
    %v697 = vld [vmem:[#allocation7 + $0x70] sm:$0xff]
    %v698 = vld [vmem:[#allocation7 + $0x78] sm:$0xff]
    %v699 = vld [vmem:[#allocation7 + $0x80] sm:$0xff]
    %v700 = vld [vmem:[#allocation7 + $0x88] sm:$0xff]
    %v701 = vld [vmem:[#allocation7 + $0x90] sm:$0xff]
    %v702 = vld [vmem:[#allocation7 + $0x98] sm:$0xff]
    %v703 = vld [vmem:[#allocation7 + $0xa0] sm:$0xff]
    %v704 = vld [vmem:[#allocation7 + $0xa8] sm:$0xff]
    %v705 = vld [vmem:[#allocation7 + $0xb0] sm:$0xff]
    %v706 = vld [vmem:[#allocation7 + $0xb8] sm:$0xff]
    %v707 = vld [vmem:[#allocation7 + $0xc0] sm:$0xff]
    %v708 = vld [vmem:[#allocation7 + $0xc8] sm:$0xff]
    %v709 = vld [vmem:[#allocation7 + $0xd0] sm:$0xff]
    %v710 = vld [vmem:[#allocation7 + $0xd8] sm:$0xff]
    %v711 = vld [vmem:[#allocation7 + $0xe0] sm:$0xff]
    %v712 = vld [vmem:[#allocation7 + $0xe8] sm:$0xff]
    %v713 = vld [vmem:[#allocation7 + $0xf0] sm:$0xff]
    %v714 = vld [vmem:[#allocation7 + $0xf8] sm:$0xff]
    %v715 = vld [vmem:[#allocation7 + $0x100] sm:$0xff]
    %v716 = vld [vmem:[#allocation7 + $0x108] sm:$0xff]
    %v717 = vld [vmem:[#allocation7 + $0x110] sm:$0xff]
    %v718 = vld [vmem:[#allocation7 + $0x118] sm:$0xff]
    %v719 = vld [vmem:[#allocation7 + $0x120] sm:$0xff]
    %v720 = vld [vmem:[#allocation7 + $0x128] sm:$0xff]
    %v721 = vld [vmem:[#allocation7 + $0x130] sm:$0xff]
    %v722 = vld [vmem:[#allocation7 + $0x138] sm:$0xff]
    %v723 = vld [vmem:[#allocation7 + $0x140] sm:$0xff]
    %v724 = vld [vmem:[#allocation7 + $0x148] sm:$0xff]
    %v725 = vld [vmem:[#allocation7 + $0x150] sm:$0xff]
    %v726 = vld [vmem:[#allocation7 + $0x158] sm:$0xff]
    %v727 = vld [vmem:[#allocation7 + $0x160] sm:$0xff]
    %v728 = vld [vmem:[#allocation7 + $0x168] sm:$0xff]
    %v729 = vld [vmem:[#allocation7 + $0x170] sm:$0xff]
    %v730 = vld [vmem:[#allocation7 + $0x178] sm:$0xff]
    %v731 = vld [vmem:[#allocation7 + $0x180] sm:$0xff]
    %v732 = vld [vmem:[#allocation7 + $0x188] sm:$0xff]
    %v733 = vld [vmem:[#allocation7 + $0x190] sm:$0xff]
    %v734 = vld [vmem:[#allocation7 + $0x198] sm:$0xff]
    %v735 = vld [vmem:[#allocation7 + $0x1a0] sm:$0xff]
    %v736 = vld [vmem:[#allocation7 + $0x1a8] sm:$0xff]
    %v737 = vld [vmem:[#allocation7 + $0x1b0] sm:$0xff]
    %v738 = vld [vmem:[#allocation7 + $0x1b8] sm:$0xff]
    %v739 = vld [vmem:[#allocation7 + $0x1c0] sm:$0xff]
    %v740 = vld [vmem:[#allocation7 + $0x1c8] sm:$0xff]
    %v741 = vld [vmem:[#allocation7 + $0x1d0] sm:$0xff]
    %v742 = vld [vmem:[#allocation7 + $0x1d8] sm:$0xff]
    %v743 = vld [vmem:[#allocation7 + $0x1e0] sm:$0xff]
    %v744 = vld [vmem:[#allocation7 + $0x1e8] sm:$0xff]
    %v745 = vld [vmem:[#allocation7 + $0x1f0] sm:$0xff]
    %v746 = vld [vmem:[#allocation7 + $0x1f8] sm:$0xff]
    %v747 = vld [vmem:[#allocation7 + $0x200] sm:$0xff]
    %v748 = vld [vmem:[#allocation7 + $0x208] sm:$0xff]
    %v749 = vld [vmem:[#allocation7 + $0x210] sm:$0xff]
    %v750 = vld [vmem:[#allocation7 + $0x218] sm:$0xff]
    %v751 = vld [vmem:[#allocation7 + $0x220] sm:$0xff]
    %v752 = vld [vmem:[#allocation7 + $0x228] sm:$0xff]
    %v753 = vld [vmem:[#allocation7 + $0x230] sm:$0xff]
    %v754 = vld [vmem:[#allocation7 + $0x238] sm:$0xff]
    %v755 = vld [vmem:[#allocation7 + $0x240] sm:$0xff]
    %v756 = vld [vmem:[#allocation7 + $0x248] sm:$0xff]
    %v757 = vld [vmem:[#allocation7 + $0x250] sm:$0xff]
    %v758 = vld [vmem:[#allocation7 + $0x258] sm:$0xff]
    %v759 = vld [vmem:[#allocation7 + $0x260] sm:$0xff]
    %v760 = vld [vmem:[#allocation7 + $0x268] sm:$0xff]
    %v761 = vld [vmem:[#allocation7 + $0x270] sm:$0xff]
    %v762 = vld [vmem:[#allocation7 + $0x278] sm:$0xff]
    %v763 = vld [vmem:[#allocation7 + $0x280] sm:$0xff]
    %v764 = vld [vmem:[#allocation7 + $0x288] sm:$0xff]
    %v765 = vld [vmem:[#allocation7 + $0x290] sm:$0xff]
    %v766 = vld [vmem:[#allocation7 + $0x298] sm:$0xff]
    %v767 = vld [vmem:[#allocation7 + $0x2a0] sm:$0xff]
    %v768 = vld [vmem:[#allocation7 + $0x2a8] sm:$0xff]
    %v769 = vld [vmem:[#allocation7 + $0x2b0] sm:$0xff]
    %v770 = vld [vmem:[#allocation7 + $0x2b8] sm:$0xff]
    %v771 = vld [vmem:[#allocation7 + $0x2c0] sm:$0xff]
    %v772 = vld [vmem:[#allocation7 + $0x2c8] sm:$0xff]
    %v773 = vld [vmem:[#allocation7 + $0x2d0] sm:$0xff]
    %v774 = vld [vmem:[#allocation7 + $0x2d8] sm:$0xff]
    %v775 = vld [vmem:[#allocation7 + $0x2e0] sm:$0xff]
    %v776 = vld [vmem:[#allocation7 + $0x2e8] sm:$0xff]
    %v777 = vld [vmem:[#allocation7 + $0x2f0] sm:$0xff]
    %v778 = vld [vmem:[#allocation7 + $0x2f8] sm:$0xff]
    %v779 = vld [vmem:[#allocation7 + $0x300] sm:$0xff]
    %v780 = vld [vmem:[#allocation7 + $0x308] sm:$0xff]
    %v781 = vld [vmem:[#allocation7 + $0x310] sm:$0xff]
    %v782 = vld [vmem:[#allocation7 + $0x318] sm:$0xff]
    %v783 = vld [vmem:[#allocation7 + $0x320] sm:$0xff]
    %v784 = vld [vmem:[#allocation7 + $0x328] sm:$0xff]
    %v785 = vld [vmem:[#allocation7 + $0x330] sm:$0xff]
    %v786 = vld [vmem:[#allocation7 + $0x338] sm:$0xff]
    %v787 = vld [vmem:[#allocation7 + $0x340] sm:$0xff]
    %v788 = vld [vmem:[#allocation7 + $0x348] sm:$0xff]
    %v789 = vld [vmem:[#allocation7 + $0x350] sm:$0xff]
    %v790 = vld [vmem:[#allocation7 + $0x358] sm:$0xff]
    %v791 = vld [vmem:[#allocation7 + $0x360] sm:$0xff]
    %v792 = vld [vmem:[#allocation7 + $0x368] sm:$0xff]
    %v793 = vld [vmem:[#allocation7 + $0x370] sm:$0xff]
    %v794 = vld [vmem:[#allocation7 + $0x378] sm:$0xff]
    %v795 = vld [vmem:[#allocation7 + $0x380] sm:$0xff]
    %v796 = vld [vmem:[#allocation7 + $0x388] sm:$0xff]
    %v797 = vld [vmem:[#allocation7 + $0x390] sm:$0xff]
    %v798 = vld [vmem:[#allocation7 + $0x398] sm:$0xff]
    %v799 = vld [vmem:[#allocation7 + $0x3a0] sm:$0xff]
    %v800 = vld [vmem:[#allocation7 + $0x3a8] sm:$0xff]
    %v801 = vld [vmem:[#allocation7 + $0x3b0] sm:$0xff]
    %v802 = vld [vmem:[#allocation7 + $0x3b8] sm:$0xff]
    %v803 = vld [vmem:[#allocation7 + $0x3c0] sm:$0xff]
    %v804 = vld [vmem:[#allocation7 + $0x3c8] sm:$0xff]
    %v805 = vld [vmem:[#allocation7 + $0x3d0] sm:$0xff]
    %v806 = vld [vmem:[#allocation7 + $0x3d8] sm:$0xff]
    %v807 = vld [vmem:[#allocation7 + $0x3e0] sm:$0xff]
    %v808 = vld [vmem:[#allocation7 + $0x3e8] sm:$0xff]
    %v809 = vld [vmem:[#allocation7 + $0x3f0] sm:$0xff]
    %v810 = vld [vmem:[#allocation7 + $0x3f8] sm:$0xff]
    %v811 = vld [vmem:[#allocation7 + $0x400] sm:$0xff]
    %v812 = vld [vmem:[#allocation7 + $0x408] sm:$0xff]
    %v813 = vld [vmem:[#allocation7 + $0x410] sm:$0xff]
    %v814 = vld [vmem:[#allocation7 + $0x418] sm:$0xff]
    %v815 = vld [vmem:[#allocation7 + $0x420] sm:$0xff]
    %v816 = vld [vmem:[#allocation7 + $0x428] sm:$0xff]
    %v817 = vld [vmem:[#allocation7 + $0x430] sm:$0xff]
    %v818 = vld [vmem:[#allocation7 + $0x438] sm:$0xff]
    %v819 = vld [vmem:[#allocation7 + $0x440] sm:$0xff]
    %v820 = vld [vmem:[#allocation7 + $0x448] sm:$0xff]
    %v821 = vld [vmem:[#allocation7 + $0x450] sm:$0xff]
    %v822 = vld [vmem:[#allocation7 + $0x458] sm:$0xff]
    %v823 = vld [vmem:[#allocation7 + $0x460] sm:$0xff]
    %v824 = vld [vmem:[#allocation7 + $0x468] sm:$0xff]
    %v825 = vld [vmem:[#allocation7 + $0x470] sm:$0xff]
    %v826 = vld [vmem:[#allocation7 + $0x478] sm:$0xff]
    %v827 = vld [vmem:[#allocation7 + $0x480] sm:$0xff]
    %v828 = vld [vmem:[#allocation7 + $0x488] sm:$0xff]
    %v829 = vld [vmem:[#allocation7 + $0x490] sm:$0xff]
    %v830 = vld [vmem:[#allocation7 + $0x498] sm:$0xff]
    %v831 = vld [vmem:[#allocation7 + $0x4a0] sm:$0xff]
    %v832 = vld [vmem:[#allocation7 + $0x4a8] sm:$0xff]
    %v833 = vld [vmem:[#allocation7 + $0x4b0] sm:$0xff]
    %v834 = vld [vmem:[#allocation7 + $0x4b8] sm:$0xff]
    %v835 = vld [vmem:[#allocation7 + $0x4c0] sm:$0xff]
    %v836 = vld [vmem:[#allocation7 + $0x4c8] sm:$0xff]
    %v837 = vld [vmem:[#allocation7 + $0x4d0] sm:$0xff]
    %v838 = vld [vmem:[#allocation7 + $0x4d8] sm:$0xff]
    %v839 = vld [vmem:[#allocation7 + $0x4e0] sm:$0xff]
    %v840 = vld [vmem:[#allocation7 + $0x4e8] sm:$0xff]
    %v841 = vld [vmem:[#allocation7 + $0x4f0] sm:$0xff]
    %v842 = vld [vmem:[#allocation7 + $0x4f8] sm:$0xff]
    %v843 = vld [vmem:[#allocation7 + $0x500] sm:$0xff]
    %v844 = vld [vmem:[#allocation7 + $0x508] sm:$0xff]
    %v845 = vld [vmem:[#allocation7 + $0x510] sm:$0xff]
    %v846 = vld [vmem:[#allocation7 + $0x518] sm:$0xff]
    %v847 = vld [vmem:[#allocation7 + $0x520] sm:$0xff]
    %v848 = vld [vmem:[#allocation7 + $0x528] sm:$0xff]
    %v849 = vld [vmem:[#allocation7 + $0x530] sm:$0xff]
    %v850 = vld [vmem:[#allocation7 + $0x538] sm:$0xff]
    %v851 = vld [vmem:[#allocation7 + $0x540] sm:$0xff]
    %v852 = vld [vmem:[#allocation7 + $0x548] sm:$0xff]
    %v853 = vld [vmem:[#allocation7 + $0x550] sm:$0xff]
    %v854 = vld [vmem:[#allocation7 + $0x558] sm:$0xff]
    %v855 = vld [vmem:[#allocation7 + $0x560] sm:$0xff]
    %v856 = vld [vmem:[#allocation7 + $0x568] sm:$0xff]
    %v857 = vld [vmem:[#allocation7 + $0x570] sm:$0xff]
    %v858 = vld [vmem:[#allocation7 + $0x578] sm:$0xff]
    %v859 = vld [vmem:[#allocation7 + $0x580] sm:$0xff]
    %v860 = vld [vmem:[#allocation7 + $0x588] sm:$0xff]
    %v861 = vld [vmem:[#allocation7 + $0x590] sm:$0xff]
    %v862 = vld [vmem:[#allocation7 + $0x598] sm:$0xff]
    %v863 = vld [vmem:[#allocation7 + $0x5a0] sm:$0xff]
    %v864 = vld [vmem:[#allocation7 + $0x5a8] sm:$0xff]
    %v865 = vld [vmem:[#allocation7 + $0x5b0] sm:$0xff]
    %v866 = vld [vmem:[#allocation7 + $0x5b8] sm:$0xff]
    %v867 = vld [vmem:[#allocation7 + $0x5c0] sm:$0xff]
    %v868 = vld [vmem:[#allocation7 + $0x5c8] sm:$0xff]
    %v869 = vld [vmem:[#allocation7 + $0x5d0] sm:$0xff]
    %v870 = vld [vmem:[#allocation7 + $0x5d8] sm:$0xff]
    %v871 = vld [vmem:[#allocation7 + $0x5e0] sm:$0xff]
    %v872 = vld [vmem:[#allocation7 + $0x5e8] sm:$0xff]
    %v873 = vld [vmem:[#allocation7 + $0x5f0] sm:$0xff]
    %v874 = vld [vmem:[#allocation7 + $0x5f8] sm:$0xff]
    %v875 = vld [vmem:[%s4] sm:$0x3f]
    %v877 = vlaneseq
    %v878 = vshrl.u32 %v877, 7
    %v879 = vsub.s32 0, %v878
    %v880 = vrot.slane %v875, %v879
    %v881 = vlaneseq
    %v882 = vshrl.u32 %v881, 7
    %v883 = vsub.s32 1, %v882
    %v884 = vrot.slane %v875, %v883
    %v885 = vlaneseq
    %v886 = vshrl.u32 %v885, 7
    %v887 = vsub.s32 2, %v886
    %v888 = vrot.slane %v875, %v887
    %v889 = vlaneseq
    %v890 = vshrl.u32 %v889, 7
    %v891 = vsub.s32 3, %v890
    %v892 = vrot.slane %v875, %v891
    %v893 = vlaneseq
    %v894 = vshrl.u32 %v893, 7
    %v895 = vsub.s32 4, %v894
    %v896 = vrot.slane %v875, %v895
    %v897 = vlaneseq
    %v898 = vshrl.u32 %v897, 7
    %v899 = vsub.s32 5, %v898
    %v900 = vrot.slane %v875, %v899
    %v1099 = vunpack.c.l.b16 %v683
    %v1100 = vunpack.c.h.b16 %v683
    %v1101 = vunpack.c.l.b16 %v684
    %v1102 = vunpack.c.h.b16 %v684
    %v1103 = vunpack.c.l.b16 %v685
    %v1104 = vunpack.c.h.b16 %v685
    %v1105 = vunpack.c.l.b16 %v686
    %v1106 = vunpack.c.h.b16 %v686
    %v1107 = vunpack.c.l.b16 %v687
    %v1108 = vunpack.c.h.b16 %v687
    %v1109 = vunpack.c.l.b16 %v688
    %v1110 = vunpack.c.h.b16 %v688
    %v1111 = vunpack.c.l.b16 %v689
    %v1112 = vunpack.c.h.b16 %v689
    %v1113 = vunpack.c.l.b16 %v690
    %v1114 = vunpack.c.h.b16 %v690
    %v1115 = vunpack.c.l.b16 %v691
    %v1116 = vunpack.c.h.b16 %v691
    %v1117 = vunpack.c.l.b16 %v692
    %v1118 = vunpack.c.h.b16 %v692
    %v1119 = vunpack.c.l.b16 %v693
    %v1120 = vunpack.c.h.b16 %v693
    %v1121 = vunpack.c.l.b16 %v694
    %v1122 = vunpack.c.h.b16 %v694
    %v1123 = vunpack.c.l.b16 %v695
    %v1124 = vunpack.c.h.b16 %v695
    %v1125 = vunpack.c.l.b16 %v696
    %v1126 = vunpack.c.h.b16 %v696
    %v1127 = vunpack.c.l.b16 %v697
    %v1128 = vunpack.c.h.b16 %v697
    %v1129 = vunpack.c.l.b16 %v698
    %v1130 = vunpack.c.h.b16 %v698
    %v1131 = vunpack.c.l.b16 %v699
    %v1132 = vunpack.c.h.b16 %v699
    %v1133 = vunpack.c.l.b16 %v700
    %v1134 = vunpack.c.h.b16 %v700
    %v1135 = vunpack.c.l.b16 %v701
    %v1136 = vunpack.c.h.b16 %v701
    %v1137 = vunpack.c.l.b16 %v702
    %v1138 = vunpack.c.h.b16 %v702
    %v1139 = vunpack.c.l.b16 %v703
    %v1140 = vunpack.c.h.b16 %v703
    %v1141 = vunpack.c.l.b16 %v704
    %v1142 = vunpack.c.h.b16 %v704
    %v1143 = vunpack.c.l.b16 %v705
    %v1144 = vunpack.c.h.b16 %v705
    %v1145 = vunpack.c.l.b16 %v706
    %v1146 = vunpack.c.h.b16 %v706
    %v1147 = vunpack.c.l.b16 %v707
    %v1148 = vunpack.c.h.b16 %v707
    %v1149 = vunpack.c.l.b16 %v708
    %v1150 = vunpack.c.h.b16 %v708
    %v1151 = vunpack.c.l.b16 %v709
    %v1152 = vunpack.c.h.b16 %v709
    %v1153 = vunpack.c.l.b16 %v710
    %v1154 = vunpack.c.h.b16 %v710
    %v1155 = vunpack.c.l.b16 %v711
    %v1156 = vunpack.c.h.b16 %v711
    %v1157 = vunpack.c.l.b16 %v712
    %v1158 = vunpack.c.h.b16 %v712
    %v1159 = vunpack.c.l.b16 %v713
    %v1160 = vunpack.c.h.b16 %v713
    %v1161 = vunpack.c.l.b16 %v714
    %v1162 = vunpack.c.h.b16 %v714
    %v1163 = vunpack.c.l.b16 %v715
    %v1164 = vunpack.c.h.b16 %v715
    %v1165 = vunpack.c.l.b16 %v716
    %v1166 = vunpack.c.h.b16 %v716
    %v1167 = vunpack.c.l.b16 %v717
    %v1168 = vunpack.c.h.b16 %v717
    %v1169 = vunpack.c.l.b16 %v718
    %v1170 = vunpack.c.h.b16 %v718
    %v1171 = vunpack.c.l.b16 %v719
    %v1172 = vunpack.c.h.b16 %v719
    %v1173 = vunpack.c.l.b16 %v720
    %v1174 = vunpack.c.h.b16 %v720
    %v1175 = vunpack.c.l.b16 %v721
    %v1176 = vunpack.c.h.b16 %v721
    %v1177 = vunpack.c.l.b16 %v722
    %v1178 = vunpack.c.h.b16 %v722
    %v1179 = vunpack.c.l.b16 %v723
    %v1180 = vunpack.c.h.b16 %v723
    %v1181 = vunpack.c.l.b16 %v724
    %v1182 = vunpack.c.h.b16 %v724
    %v1183 = vunpack.c.l.b16 %v725
    %v1184 = vunpack.c.h.b16 %v725
    %v1185 = vunpack.c.l.b16 %v726
    %v1186 = vunpack.c.h.b16 %v726
    %v1187 = vunpack.c.l.b16 %v727
    %v1188 = vunpack.c.h.b16 %v727
    %v1189 = vunpack.c.l.b16 %v728
    %v1190 = vunpack.c.h.b16 %v728
    %v1191 = vunpack.c.l.b16 %v729
    %v1192 = vunpack.c.h.b16 %v729
    %v1193 = vunpack.c.l.b16 %v730
    %v1194 = vunpack.c.h.b16 %v730
    %v1195 = vunpack.c.l.b16 %v731
    %v1196 = vunpack.c.h.b16 %v731
    %v1197 = vunpack.c.l.b16 %v732
    %v1198 = vunpack.c.h.b16 %v732
    %v1199 = vunpack.c.l.b16 %v733
    %v1200 = vunpack.c.h.b16 %v733
    %v1201 = vunpack.c.l.b16 %v734
    %v1202 = vunpack.c.h.b16 %v734
    %v1203 = vunpack.c.l.b16 %v735
    %v1204 = vunpack.c.h.b16 %v735
    %v1205 = vunpack.c.l.b16 %v736
    %v1206 = vunpack.c.h.b16 %v736
    %v1207 = vunpack.c.l.b16 %v737
    %v1208 = vunpack.c.h.b16 %v737
    %v1209 = vunpack.c.l.b16 %v738
    %v1210 = vunpack.c.h.b16 %v738
    %v1211 = vunpack.c.l.b16 %v739
    %v1212 = vunpack.c.h.b16 %v739
    %v1213 = vunpack.c.l.b16 %v740
    %v1214 = vunpack.c.h.b16 %v740
    %v1215 = vunpack.c.l.b16 %v741
    %v1216 = vunpack.c.h.b16 %v741
    %v1217 = vunpack.c.l.b16 %v742
    %v1218 = vunpack.c.h.b16 %v742
    %v1219 = vunpack.c.l.b16 %v743
    %v1220 = vunpack.c.h.b16 %v743
    %v1221 = vunpack.c.l.b16 %v744
    %v1222 = vunpack.c.h.b16 %v744
    %v1223 = vunpack.c.l.b16 %v745
    %v1224 = vunpack.c.h.b16 %v745
    %v1225 = vunpack.c.l.b16 %v746
    %v1226 = vunpack.c.h.b16 %v746
    %v1227 = vunpack.c.l.b16 %v747
    %v1228 = vunpack.c.h.b16 %v747
    %v1229 = vunpack.c.l.b16 %v748
    %v1230 = vunpack.c.h.b16 %v748
    %v1231 = vunpack.c.l.b16 %v749
    %v1232 = vunpack.c.h.b16 %v749
    %v1233 = vunpack.c.l.b16 %v750
    %v1234 = vunpack.c.h.b16 %v750
    %v1235 = vunpack.c.l.b16 %v751
    %v1236 = vunpack.c.h.b16 %v751
    %v1237 = vunpack.c.l.b16 %v752
    %v1238 = vunpack.c.h.b16 %v752
    %v1239 = vunpack.c.l.b16 %v753
    %v1240 = vunpack.c.h.b16 %v753
    %v1241 = vunpack.c.l.b16 %v754
    %v1242 = vunpack.c.h.b16 %v754
    %v1243 = vunpack.c.l.b16 %v755
    %v1244 = vunpack.c.h.b16 %v755
    %v1245 = vunpack.c.l.b16 %v756
    %v1246 = vunpack.c.h.b16 %v756
    %v1247 = vunpack.c.l.b16 %v757
    %v1248 = vunpack.c.h.b16 %v757
    %v1249 = vunpack.c.l.b16 %v758
    %v1250 = vunpack.c.h.b16 %v758
    %v1251 = vunpack.c.l.b16 %v759
    %v1252 = vunpack.c.h.b16 %v759
    %v1253 = vunpack.c.l.b16 %v760
    %v1254 = vunpack.c.h.b16 %v760
    %v1255 = vunpack.c.l.b16 %v761
    %v1256 = vunpack.c.h.b16 %v761
    %v1257 = vunpack.c.l.b16 %v762
    %v1258 = vunpack.c.h.b16 %v762
    %v1259 = vunpack.c.l.b16 %v763
    %v1260 = vunpack.c.h.b16 %v763
    %v1261 = vunpack.c.l.b16 %v764
    %v1262 = vunpack.c.h.b16 %v764
    %v1263 = vunpack.c.l.b16 %v765
    %v1264 = vunpack.c.h.b16 %v765
    %v1265 = vunpack.c.l.b16 %v766
    %v1266 = vunpack.c.h.b16 %v766
    %v1267 = vunpack.c.l.b16 %v767
    %v1268 = vunpack.c.h.b16 %v767
    %v1269 = vunpack.c.l.b16 %v768
    %v1270 = vunpack.c.h.b16 %v768
    %v1271 = vunpack.c.l.b16 %v769
    %v1272 = vunpack.c.h.b16 %v769
    %v1273 = vunpack.c.l.b16 %v770
    %v1274 = vunpack.c.h.b16 %v770
    %v1275 = vunpack.c.l.b16 %v771
    %v1276 = vunpack.c.h.b16 %v771
    %v1277 = vunpack.c.l.b16 %v772
    %v1278 = vunpack.c.h.b16 %v772
    %v1279 = vunpack.c.l.b16 %v773
    %v1280 = vunpack.c.h.b16 %v773
    %v1281 = vunpack.c.l.b16 %v774
    %v1282 = vunpack.c.h.b16 %v774
    %v1283 = vunpack.c.l.b16 %v775
    %v1284 = vunpack.c.h.b16 %v775
    %v1285 = vunpack.c.l.b16 %v776
    %v1286 = vunpack.c.h.b16 %v776
    %v1287 = vunpack.c.l.b16 %v777
    %v1288 = vunpack.c.h.b16 %v777
    %v1289 = vunpack.c.l.b16 %v778
    %v1290 = vunpack.c.h.b16 %v778
    %v1291 = vunpack.c.l.b16 %v779
    %v1292 = vunpack.c.h.b16 %v779
    %v1293 = vunpack.c.l.b16 %v780
    %v1294 = vunpack.c.h.b16 %v780
    %v1295 = vunpack.c.l.b16 %v781
    %v1296 = vunpack.c.h.b16 %v781
    %v1297 = vunpack.c.l.b16 %v782
    %v1298 = vunpack.c.h.b16 %v782
    %v1299 = vunpack.c.l.b16 %v783
    %v1300 = vunpack.c.h.b16 %v783
    %v1301 = vunpack.c.l.b16 %v784
    %v1302 = vunpack.c.h.b16 %v784
    %v1303 = vunpack.c.l.b16 %v785
    %v1304 = vunpack.c.h.b16 %v785
    %v1305 = vunpack.c.l.b16 %v786
    %v1306 = vunpack.c.h.b16 %v786
    %v1307 = vunpack.c.l.b16 %v787
    %v1308 = vunpack.c.h.b16 %v787
    %v1309 = vunpack.c.l.b16 %v788
    %v1310 = vunpack.c.h.b16 %v788
    %v1311 = vunpack.c.l.b16 %v789
    %v1312 = vunpack.c.h.b16 %v789
    %v1313 = vunpack.c.l.b16 %v790
    %v1314 = vunpack.c.h.b16 %v790
    %v1315 = vunpack.c.l.b16 %v791
    %v1316 = vunpack.c.h.b16 %v791
    %v1317 = vunpack.c.l.b16 %v792
    %v1318 = vunpack.c.h.b16 %v792
    %v1319 = vunpack.c.l.b16 %v793
    %v1320 = vunpack.c.h.b16 %v793
    %v1321 = vunpack.c.l.b16 %v794
    %v1322 = vunpack.c.h.b16 %v794
    %v1323 = vunpack.c.l.b16 %v795
    %v1324 = vunpack.c.h.b16 %v795
    %v1325 = vunpack.c.l.b16 %v796
    %v1326 = vunpack.c.h.b16 %v796
    %v1327 = vunpack.c.l.b16 %v797
    %v1328 = vunpack.c.h.b16 %v797
    %v1329 = vunpack.c.l.b16 %v798
    %v1330 = vunpack.c.h.b16 %v798
    %v1331 = vunpack.c.l.b16 %v799
    %v1332 = vunpack.c.h.b16 %v799
    %v1333 = vunpack.c.l.b16 %v800
    %v1334 = vunpack.c.h.b16 %v800
    %v1335 = vunpack.c.l.b16 %v801
    %v1336 = vunpack.c.h.b16 %v801
    %v1337 = vunpack.c.l.b16 %v802
    %v1338 = vunpack.c.h.b16 %v802
    %v1339 = vunpack.c.l.b16 %v803
    %v1340 = vunpack.c.h.b16 %v803
    %v1341 = vunpack.c.l.b16 %v804
    %v1342 = vunpack.c.h.b16 %v804
    %v1343 = vunpack.c.l.b16 %v805
    %v1344 = vunpack.c.h.b16 %v805
    %v1345 = vunpack.c.l.b16 %v806
    %v1346 = vunpack.c.h.b16 %v806
    %v1347 = vunpack.c.l.b16 %v807
    %v1348 = vunpack.c.h.b16 %v807
    %v1349 = vunpack.c.l.b16 %v808
    %v1350 = vunpack.c.h.b16 %v808
    %v1351 = vunpack.c.l.b16 %v809
    %v1352 = vunpack.c.h.b16 %v809
    %v1353 = vunpack.c.l.b16 %v810
    %v1354 = vunpack.c.h.b16 %v810
    %v1355 = vunpack.c.l.b16 %v811
    %v1356 = vunpack.c.h.b16 %v811
    %v1357 = vunpack.c.l.b16 %v812
    %v1358 = vunpack.c.h.b16 %v812
    %v1359 = vunpack.c.l.b16 %v813
    %v1360 = vunpack.c.h.b16 %v813
    %v1361 = vunpack.c.l.b16 %v814
    %v1362 = vunpack.c.h.b16 %v814
    %v1363 = vunpack.c.l.b16 %v815
    %v1364 = vunpack.c.h.b16 %v815
    %v1365 = vunpack.c.l.b16 %v816
    %v1366 = vunpack.c.h.b16 %v816
    %v1367 = vunpack.c.l.b16 %v817
    %v1368 = vunpack.c.h.b16 %v817
    %v1369 = vunpack.c.l.b16 %v818
    %v1370 = vunpack.c.h.b16 %v818
    %v1371 = vunpack.c.l.b16 %v819
    %v1372 = vunpack.c.h.b16 %v819
    %v1373 = vunpack.c.l.b16 %v820
    %v1374 = vunpack.c.h.b16 %v820
    %v1375 = vunpack.c.l.b16 %v821
    %v1376 = vunpack.c.h.b16 %v821
    %v1377 = vunpack.c.l.b16 %v822
    %v1378 = vunpack.c.h.b16 %v822
    %v1379 = vunpack.c.l.b16 %v823
    %v1380 = vunpack.c.h.b16 %v823
    %v1381 = vunpack.c.l.b16 %v824
    %v1382 = vunpack.c.h.b16 %v824
    %v1383 = vunpack.c.l.b16 %v825
    %v1384 = vunpack.c.h.b16 %v825
    %v1385 = vunpack.c.l.b16 %v826
    %v1386 = vunpack.c.h.b16 %v826
    %v1387 = vunpack.c.l.b16 %v827
    %v1388 = vunpack.c.h.b16 %v827
    %v1389 = vunpack.c.l.b16 %v828
    %v1390 = vunpack.c.h.b16 %v828
    %v1391 = vunpack.c.l.b16 %v829
    %v1392 = vunpack.c.h.b16 %v829
    %v1393 = vunpack.c.l.b16 %v830
    %v1394 = vunpack.c.h.b16 %v830
    %v1395 = vunpack.c.l.b16 %v831
    %v1396 = vunpack.c.h.b16 %v831
    %v1397 = vunpack.c.l.b16 %v832
    %v1398 = vunpack.c.h.b16 %v832
    %v1399 = vunpack.c.l.b16 %v833
    %v1400 = vunpack.c.h.b16 %v833
    %v1401 = vunpack.c.l.b16 %v834
    %v1402 = vunpack.c.h.b16 %v834
    %v1403 = vunpack.c.l.b16 %v835
    %v1404 = vunpack.c.h.b16 %v835
    %v1405 = vunpack.c.l.b16 %v836
    %v1406 = vunpack.c.h.b16 %v836
    %v1407 = vunpack.c.l.b16 %v837
    %v1408 = vunpack.c.h.b16 %v837
    %v1409 = vunpack.c.l.b16 %v838
    %v1410 = vunpack.c.h.b16 %v838
    %v1411 = vunpack.c.l.b16 %v839
    %v1412 = vunpack.c.h.b16 %v839
    %v1413 = vunpack.c.l.b16 %v840
    %v1414 = vunpack.c.h.b16 %v840
    %v1415 = vunpack.c.l.b16 %v841
    %v1416 = vunpack.c.h.b16 %v841
    %v1417 = vunpack.c.l.b16 %v842
    %v1418 = vunpack.c.h.b16 %v842
    %v1419 = vunpack.c.l.b16 %v843
    %v1420 = vunpack.c.h.b16 %v843
    %v1421 = vunpack.c.l.b16 %v844
    %v1422 = vunpack.c.h.b16 %v844
    %v1423 = vunpack.c.l.b16 %v845
    %v1424 = vunpack.c.h.b16 %v845
    %v1425 = vunpack.c.l.b16 %v846
    %v1426 = vunpack.c.h.b16 %v846
    %v1427 = vunpack.c.l.b16 %v847
    %v1428 = vunpack.c.h.b16 %v847
    %v1429 = vunpack.c.l.b16 %v848
    %v1430 = vunpack.c.h.b16 %v848
    %v1431 = vunpack.c.l.b16 %v849
    %v1432 = vunpack.c.h.b16 %v849
    %v1433 = vunpack.c.l.b16 %v850
    %v1434 = vunpack.c.h.b16 %v850
    %v1435 = vunpack.c.l.b16 %v851
    %v1436 = vunpack.c.h.b16 %v851
    %v1437 = vunpack.c.l.b16 %v852
    %v1438 = vunpack.c.h.b16 %v852
    %v1439 = vunpack.c.l.b16 %v853
    %v1440 = vunpack.c.h.b16 %v853
    %v1441 = vunpack.c.l.b16 %v854
    %v1442 = vunpack.c.h.b16 %v854
    %v1443 = vunpack.c.l.b16 %v855
    %v1444 = vunpack.c.h.b16 %v855
    %v1445 = vunpack.c.l.b16 %v856
    %v1446 = vunpack.c.h.b16 %v856
    %v1447 = vunpack.c.l.b16 %v857
    %v1448 = vunpack.c.h.b16 %v857
    %v1449 = vunpack.c.l.b16 %v858
    %v1450 = vunpack.c.h.b16 %v858
    %v1451 = vunpack.c.l.b16 %v859
    %v1452 = vunpack.c.h.b16 %v859
    %v1453 = vunpack.c.l.b16 %v860
    %v1454 = vunpack.c.h.b16 %v860
    %v1455 = vunpack.c.l.b16 %v861
    %v1456 = vunpack.c.h.b16 %v861
    %v1457 = vunpack.c.l.b16 %v862
    %v1458 = vunpack.c.h.b16 %v862
    %v1459 = vunpack.c.l.b16 %v863
    %v1460 = vunpack.c.h.b16 %v863
    %v1461 = vunpack.c.l.b16 %v864
    %v1462 = vunpack.c.h.b16 %v864
    %v1463 = vunpack.c.l.b16 %v865
    %v1464 = vunpack.c.h.b16 %v865
    %v1465 = vunpack.c.l.b16 %v866
    %v1466 = vunpack.c.h.b16 %v866
    %v1467 = vunpack.c.l.b16 %v867
    %v1468 = vunpack.c.h.b16 %v867
    %v1469 = vunpack.c.l.b16 %v868
    %v1470 = vunpack.c.h.b16 %v868
    %v1471 = vunpack.c.l.b16 %v869
    %v1472 = vunpack.c.h.b16 %v869
    %v1473 = vunpack.c.l.b16 %v870
    %v1474 = vunpack.c.h.b16 %v870
    %v1475 = vunpack.c.l.b16 %v871
    %v1476 = vunpack.c.h.b16 %v871
    %v1477 = vunpack.c.l.b16 %v872
    %v1478 = vunpack.c.h.b16 %v872
    %v1479 = vunpack.c.l.b16 %v873
    %v1480 = vunpack.c.h.b16 %v873
    %v1481 = vunpack.c.l.b16 %v874
    %v1482 = vunpack.c.h.b16 %v874
    %v1483 = vpack.c.b16 %v1105, %v1099
    %v1484 = vpack.c.b16 %v1106, %v1100
    %v1485 = vpack.c.b16 %v1107, %v1101
    %v1486 = vpack.c.b16 %v1108, %v1102
    %v1487 = vpack.c.b16 %v1109, %v1103
    %v1488 = vpack.c.b16 %v1110, %v1104
    %v1489 = vpack.c.b16 %v1117, %v1111
    %v1490 = vpack.c.b16 %v1118, %v1112
    %v1491 = vpack.c.b16 %v1119, %v1113
    %v1492 = vpack.c.b16 %v1120, %v1114
    %v1493 = vpack.c.b16 %v1121, %v1115
    %v1494 = vpack.c.b16 %v1122, %v1116
    %v1495 = vpack.c.b16 %v1129, %v1123
    %v1496 = vpack.c.b16 %v1130, %v1124
    %v1497 = vpack.c.b16 %v1131, %v1125
    %v1498 = vpack.c.b16 %v1132, %v1126
    %v1499 = vpack.c.b16 %v1133, %v1127
    %v1500 = vpack.c.b16 %v1134, %v1128
    %v1501 = vpack.c.b16 %v1141, %v1135
    %v1502 = vpack.c.b16 %v1142, %v1136
    %v1503 = vpack.c.b16 %v1143, %v1137
    %v1504 = vpack.c.b16 %v1144, %v1138
    %v1505 = vpack.c.b16 %v1145, %v1139
    %v1506 = vpack.c.b16 %v1146, %v1140
    %v1507 = vpack.c.b16 %v1153, %v1147
    %v1508 = vpack.c.b16 %v1154, %v1148
    %v1509 = vpack.c.b16 %v1155, %v1149
    %v1510 = vpack.c.b16 %v1156, %v1150
    %v1511 = vpack.c.b16 %v1157, %v1151
    %v1512 = vpack.c.b16 %v1158, %v1152
    %v1513 = vpack.c.b16 %v1165, %v1159
    %v1514 = vpack.c.b16 %v1166, %v1160
    %v1515 = vpack.c.b16 %v1167, %v1161
    %v1516 = vpack.c.b16 %v1168, %v1162
    %v1517 = vpack.c.b16 %v1169, %v1163
    %v1518 = vpack.c.b16 %v1170, %v1164
    %v1519 = vpack.c.b16 %v1177, %v1171
    %v1520 = vpack.c.b16 %v1178, %v1172
    %v1521 = vpack.c.b16 %v1179, %v1173
    %v1522 = vpack.c.b16 %v1180, %v1174
    %v1523 = vpack.c.b16 %v1181, %v1175
    %v1524 = vpack.c.b16 %v1182, %v1176
    %v1525 = vpack.c.b16 %v1189, %v1183
    %v1526 = vpack.c.b16 %v1190, %v1184
    %v1527 = vpack.c.b16 %v1191, %v1185
    %v1528 = vpack.c.b16 %v1192, %v1186
    %v1529 = vpack.c.b16 %v1193, %v1187
    %v1530 = vpack.c.b16 %v1194, %v1188
    %v1531 = vpack.c.b16 %v1201, %v1195
    %v1532 = vpack.c.b16 %v1202, %v1196
    %v1533 = vpack.c.b16 %v1203, %v1197
    %v1534 = vpack.c.b16 %v1204, %v1198
    %v1535 = vpack.c.b16 %v1205, %v1199
    %v1536 = vpack.c.b16 %v1206, %v1200
    %v1537 = vpack.c.b16 %v1213, %v1207
    %v1538 = vpack.c.b16 %v1214, %v1208
    %v1539 = vpack.c.b16 %v1215, %v1209
    %v1540 = vpack.c.b16 %v1216, %v1210
    %v1541 = vpack.c.b16 %v1217, %v1211
    %v1542 = vpack.c.b16 %v1218, %v1212
    %v1543 = vpack.c.b16 %v1225, %v1219
    %v1544 = vpack.c.b16 %v1226, %v1220
    %v1545 = vpack.c.b16 %v1227, %v1221
    %v1546 = vpack.c.b16 %v1228, %v1222
    %v1547 = vpack.c.b16 %v1229, %v1223
    %v1548 = vpack.c.b16 %v1230, %v1224
    %v1549 = vpack.c.b16 %v1237, %v1231
    %v1550 = vpack.c.b16 %v1238, %v1232
    %v1551 = vpack.c.b16 %v1239, %v1233
    %v1552 = vpack.c.b16 %v1240, %v1234
    %v1553 = vpack.c.b16 %v1241, %v1235
    %v1554 = vpack.c.b16 %v1242, %v1236
    %v1555 = vpack.c.b16 %v1249, %v1243
    %v1556 = vpack.c.b16 %v1250, %v1244
    %v1557 = vpack.c.b16 %v1251, %v1245
    %v1558 = vpack.c.b16 %v1252, %v1246
    %v1559 = vpack.c.b16 %v1253, %v1247
    %v1560 = vpack.c.b16 %v1254, %v1248
    %v1561 = vpack.c.b16 %v1261, %v1255
    %v1562 = vpack.c.b16 %v1262, %v1256
    %v1563 = vpack.c.b16 %v1263, %v1257
    %v1564 = vpack.c.b16 %v1264, %v1258
    %v1565 = vpack.c.b16 %v1265, %v1259
    %v1566 = vpack.c.b16 %v1266, %v1260
    %v1567 = vpack.c.b16 %v1273, %v1267
    %v1568 = vpack.c.b16 %v1274, %v1268
    %v1569 = vpack.c.b16 %v1275, %v1269
    %v1570 = vpack.c.b16 %v1276, %v1270
    %v1571 = vpack.c.b16 %v1277, %v1271
    %v1572 = vpack.c.b16 %v1278, %v1272
    %v1573 = vpack.c.b16 %v1285, %v1279
    %v1574 = vpack.c.b16 %v1286, %v1280
    %v1575 = vpack.c.b16 %v1287, %v1281
    %v1576 = vpack.c.b16 %v1288, %v1282
    %v1577 = vpack.c.b16 %v1289, %v1283
    %v1578 = vpack.c.b16 %v1290, %v1284
    %v1579 = vpack.c.b16 %v1297, %v1291
    %v1580 = vpack.c.b16 %v1298, %v1292
    %v1581 = vpack.c.b16 %v1299, %v1293
    %v1582 = vpack.c.b16 %v1300, %v1294
    %v1583 = vpack.c.b16 %v1301, %v1295
    %v1584 = vpack.c.b16 %v1302, %v1296
    %v1585 = vpack.c.b16 %v1309, %v1303
    %v1586 = vpack.c.b16 %v1310, %v1304
    %v1587 = vpack.c.b16 %v1311, %v1305
    %v1588 = vpack.c.b16 %v1312, %v1306
    %v1589 = vpack.c.b16 %v1313, %v1307
    %v1590 = vpack.c.b16 %v1314, %v1308
    %v1591 = vpack.c.b16 %v1321, %v1315
    %v1592 = vpack.c.b16 %v1322, %v1316
    %v1593 = vpack.c.b16 %v1323, %v1317
    %v1594 = vpack.c.b16 %v1324, %v1318
    %v1595 = vpack.c.b16 %v1325, %v1319
    %v1596 = vpack.c.b16 %v1326, %v1320
    %v1597 = vpack.c.b16 %v1333, %v1327
    %v1598 = vpack.c.b16 %v1334, %v1328
    %v1599 = vpack.c.b16 %v1335, %v1329
    %v1600 = vpack.c.b16 %v1336, %v1330
    %v1601 = vpack.c.b16 %v1337, %v1331
    %v1602 = vpack.c.b16 %v1338, %v1332
    %v1603 = vpack.c.b16 %v1345, %v1339
    %v1604 = vpack.c.b16 %v1346, %v1340
    %v1605 = vpack.c.b16 %v1347, %v1341
    %v1606 = vpack.c.b16 %v1348, %v1342
    %v1607 = vpack.c.b16 %v1349, %v1343
    %v1608 = vpack.c.b16 %v1350, %v1344
    %v1609 = vpack.c.b16 %v1357, %v1351
    %v1610 = vpack.c.b16 %v1358, %v1352
    %v1611 = vpack.c.b16 %v1359, %v1353
    %v1612 = vpack.c.b16 %v1360, %v1354
    %v1613 = vpack.c.b16 %v1361, %v1355
    %v1614 = vpack.c.b16 %v1362, %v1356
    %v1615 = vpack.c.b16 %v1369, %v1363
    %v1616 = vpack.c.b16 %v1370, %v1364
    %v1617 = vpack.c.b16 %v1371, %v1365
    %v1618 = vpack.c.b16 %v1372, %v1366
    %v1619 = vpack.c.b16 %v1373, %v1367
    %v1620 = vpack.c.b16 %v1374, %v1368
    %v1621 = vpack.c.b16 %v1381, %v1375
    %v1622 = vpack.c.b16 %v1382, %v1376
    %v1623 = vpack.c.b16 %v1383, %v1377
    %v1624 = vpack.c.b16 %v1384, %v1378
    %v1625 = vpack.c.b16 %v1385, %v1379
    %v1626 = vpack.c.b16 %v1386, %v1380
    %v1627 = vpack.c.b16 %v1393, %v1387
    %v1628 = vpack.c.b16 %v1394, %v1388
    %v1629 = vpack.c.b16 %v1395, %v1389
    %v1630 = vpack.c.b16 %v1396, %v1390
    %v1631 = vpack.c.b16 %v1397, %v1391
    %v1632 = vpack.c.b16 %v1398, %v1392
    %v1633 = vpack.c.b16 %v1405, %v1399
    %v1634 = vpack.c.b16 %v1406, %v1400
    %v1635 = vpack.c.b16 %v1407, %v1401
    %v1636 = vpack.c.b16 %v1408, %v1402
    %v1637 = vpack.c.b16 %v1409, %v1403
    %v1638 = vpack.c.b16 %v1410, %v1404
    %v1639 = vpack.c.b16 %v1417, %v1411
    %v1640 = vpack.c.b16 %v1418, %v1412
    %v1641 = vpack.c.b16 %v1419, %v1413
    %v1642 = vpack.c.b16 %v1420, %v1414
    %v1643 = vpack.c.b16 %v1421, %v1415
    %v1644 = vpack.c.b16 %v1422, %v1416
    %v1645 = vpack.c.b16 %v1429, %v1423
    %v1646 = vpack.c.b16 %v1430, %v1424
    %v1647 = vpack.c.b16 %v1431, %v1425
    %v1648 = vpack.c.b16 %v1432, %v1426
    %v1649 = vpack.c.b16 %v1433, %v1427
    %v1650 = vpack.c.b16 %v1434, %v1428
    %v1651 = vpack.c.b16 %v1441, %v1435
    %v1652 = vpack.c.b16 %v1442, %v1436
    %v1653 = vpack.c.b16 %v1443, %v1437
    %v1654 = vpack.c.b16 %v1444, %v1438
    %v1655 = vpack.c.b16 %v1445, %v1439
    %v1656 = vpack.c.b16 %v1446, %v1440
    %v1657 = vpack.c.b16 %v1453, %v1447
    %v1658 = vpack.c.b16 %v1454, %v1448
    %v1659 = vpack.c.b16 %v1455, %v1449
    %v1660 = vpack.c.b16 %v1456, %v1450
    %v1661 = vpack.c.b16 %v1457, %v1451
    %v1662 = vpack.c.b16 %v1458, %v1452
    %v1663 = vpack.c.b16 %v1465, %v1459
    %v1664 = vpack.c.b16 %v1466, %v1460
    %v1665 = vpack.c.b16 %v1467, %v1461
    %v1666 = vpack.c.b16 %v1468, %v1462
    %v1667 = vpack.c.b16 %v1469, %v1463
    %v1668 = vpack.c.b16 %v1470, %v1464
    %v1669 = vpack.c.b16 %v1477, %v1471
    %v1670 = vpack.c.b16 %v1478, %v1472
    %v1671 = vpack.c.b16 %v1479, %v1473
    %v1672 = vpack.c.b16 %v1480, %v1474
    %v1673 = vpack.c.b16 %v1481, %v1475
    %v1674 = vpack.c.b16 %v1482, %v1476
    %1867 = vmatprep.subr.bf16.mxu0 %v1484
    %1868 = vmatpush1.bf16.msra.mxu0 %v1483
    %1869 = vmatprep.subr.bf16.mxu0 %v1490
    %1870 = vmatpush1.bf16.msra.mxu0 %v1489
    %1871 = vmatprep.subr.bf16.mxu0 %v1496
    %1872 = vmatpush1.bf16.msra.mxu0 %v1495
    %1873 = vmatprep.subr.bf16.mxu0 %v1502
    %1874 = vmatpush1.bf16.msra.mxu0 %v1501
    %1875 = vmatprep.subr.bf16.mxu0 %v1508
    %1876 = vmatpush1.bf16.msra.mxu0 %v1507
    %1877 = vmatprep.subr.bf16.mxu0 %v1514
    %1878 = vmatpush1.bf16.msra.mxu0 %v1513
    %1879 = vmatprep.subr.bf16.mxu0 %v1520
    %1880 = vmatpush1.bf16.msra.mxu0 %v1519
    %1881 = vmatprep.subr.bf16.mxu0 %v1526
    %1882 = vmatpush1.bf16.msra.mxu0 %v1525
    %1883 = vmatprep.subr.bf16.mxu0 %v1532
    %1884 = vmatpush1.bf16.msra.mxu0 %v1531
    %1885 = vmatprep.subr.bf16.mxu0 %v1538
    %1886 = vmatpush1.bf16.msra.mxu0 %v1537
    %1887 = vmatprep.subr.bf16.mxu0 %v1544
    %1888 = vmatpush1.bf16.msra.mxu0 %v1543
    %1889 = vmatprep.subr.bf16.mxu0 %v1550
    %1890 = vmatpush1.bf16.msra.mxu0 %v1549
    %1891 = vmatprep.subr.bf16.mxu0 %v1556
    %1892 = vmatpush1.bf16.msra.mxu0 %v1555
    %1893 = vmatprep.subr.bf16.mxu0 %v1562
    %1894 = vmatpush1.bf16.msra.mxu0 %v1561
    %1895 = vmatprep.subr.bf16.mxu0 %v1568
    %1896 = vmatpush1.bf16.msra.mxu0 %v1567
    %1897 = vmatprep.subr.bf16.mxu0 %v1574
    %1898 = vmatpush1.bf16.msra.mxu0 %v1573
    %1899 = vmatprep.mubr.bf16.mxu0 %v652
    %1900 = vmatmul.mubr.bf16.gmra.mrb[0].mxu0 %v651
    %v1901 = vpop.f32.mrb[0].mxu0
    %v1902 = vadd.f32 %v880, %v1901
    %v1903 = vpop.f32.mrb[0].mxu0
    %v1904 = vadd.f32 %v884, %v1903
    %v1905 = vpop.f32.mrb[0].mxu0
    %v1906 = vadd.f32 %v880, %v1905
    %v1907 = vpop.f32.mrb[0].mxu0
    %v1908 = vadd.f32 %v884, %v1907
    %1909 = vmatprep.mubr.bf16.mxu0 %v656
    %1910 = vmatmul.mubr.bf16.gmra.mrb[0].mxu0 %v655
    %v1911 = vpop.f32.mrb[0].mxu0
    %v1912 = vadd.f32 %v880, %v1911
    %v1913 = vpop.f32.mrb[0].mxu0
    %v1914 = vadd.f32 %v884, %v1913
    %v1915 = vpop.f32.mrb[0].mxu0
    %v1916 = vadd.f32 %v880, %v1915
    %v1917 = vpop.f32.mrb[0].mxu0
    %v1918 = vadd.f32 %v884, %v1917
    %1919 = vmatprep.mubr.bf16.mxu0 %v660
    %1920 = vmatmul.mubr.bf16.gmra.mrb[0].mxu0 %v659
    %v1921 = vpop.f32.mrb[0].mxu0
    %v1922 = vadd.f32 %v880, %v1921
    %v1923 = vpop.f32.mrb[0].mxu0
    %v1924 = vadd.f32 %v884, %v1923
    %v1925 = vpop.f32.mrb[0].mxu0
    %v1926 = vadd.f32 %v880, %v1925
    %v1927 = vpop.f32.mrb[0].mxu0
    %v1928 = vadd.f32 %v884, %v1927
    %1929 = vmatprep.mubr.bf16.mxu0 %v664
    %1930 = vmatmul.mubr.bf16.gmra.mrb[0].mxu0 %v663
    %v1931 = vpop.f32.mrb[0].mxu0
    %v1932 = vadd.f32 %v880, %v1931
    %v1933 = vpop.f32.mrb[0].mxu0
    %v1934 = vadd.f32 %v884, %v1933
    %v1935 = vpop.f32.mrb[0].mxu0
    %v1936 = vadd.f32 %v880, %v1935
    %v1937 = vpop.f32.mrb[0].mxu0
    %v1938 = vadd.f32 %v884, %v1937
    %1939 = vmatprep.mubr.bf16.mxu0 %v668
    %1940 = vmatmul.mubr.bf16.gmra.mrb[0].mxu0 %v667
    %v1941 = vpop.f32.mrb[0].mxu0
    %v1942 = vadd.f32 %v880, %v1941
    %v1943 = vpop.f32.mrb[0].mxu0
    %v1944 = vadd.f32 %v884, %v1943
    %v1945 = vpop.f32.mrb[0].mxu0
    %v1946 = vadd.f32 %v880, %v1945
    %v1947 = vpop.f32.mrb[0].mxu0
    %v1948 = vadd.f32 %v884, %v1947
    %1949 = vmatprep.mubr.bf16.mxu0 %v672
    %1950 = vmatmul.mubr.bf16.gmra.mrb[0].mxu0 %v671
    %v1951 = vpop.f32.mrb[0].mxu0
    %v1952 = vadd.f32 %v880, %v1951
    %v1953 = vpop.f32.mrb[0].mxu0
    %v1954 = vadd.f32 %v884, %v1953
    %v1955 = vpop.f32.mrb[0].mxu0
    %v1956 = vadd.f32 %v880, %v1955
    %v1957 = vpop.f32.mrb[0].mxu0
    %v1958 = vadd.f32 %v884, %v1957
    %1959 = vmatprep.mubr.bf16.mxu0 %v676
    %1960 = vmatmul.mubr.bf16.gmra.mrb[0].mxu0 %v675
    %v1961 = vpop.f32.mrb[0].mxu0
    %v1962 = vadd.f32 %v880, %v1961
    %v1963 = vpop.f32.mrb[0].mxu0
    %v1964 = vadd.f32 %v884, %v1963
    %v1965 = vpop.f32.mrb[0].mxu0
    %v1966 = vadd.f32 %v880, %v1965
    %v1967 = vpop.f32.mrb[0].mxu0
    %v1968 = vadd.f32 %v884, %v1967
    %1969 = vmatprep.mubr.bf16.mxu0 %v680
    %1970 = vmatmul.mubr.bf16.gmra.mrb[0].mxu0 %v679
    %v1971 = vpop.f32.mrb[0].mxu0
    %v1972 = vadd.f32 %v880, %v1971
    %v1973 = vpop.f32.mrb[0].mxu0
    %v1974 = vadd.f32 %v884, %v1973
    %v1975 = vpop.f32.mrb[0].mxu0
    %v1976 = vadd.f32 %v880, %v1975
    %v1977 = vpop.f32.mrb[0].mxu0
    %v1978 = vadd.f32 %v884, %v1977
    %1979 = vdwg.mxu0
    %1980 = vmatprep.subr.bf16.mxu0 %v1580
    %1981 = vmatpush1.bf16.msra.mxu0 %v1579
    %1982 = vmatprep.subr.bf16.mxu0 %v1586
    %1983 = vmatpush1.bf16.msra.mxu0 %v1585
    %1984 = vmatprep.subr.bf16.mxu0 %v1592
    %1985 = vmatpush1.bf16.msra.mxu0 %v1591
    %1986 = vmatprep.subr.bf16.mxu0 %v1598
    %1987 = vmatpush1.bf16.msra.mxu0 %v1597
    %1988 = vmatprep.subr.bf16.mxu0 %v1604
    %1989 = vmatpush1.bf16.msra.mxu0 %v1603
    %1990 = vmatprep.subr.bf16.mxu0 %v1610
    %1991 = vmatpush1.bf16.msra.mxu0 %v1609
    %1992 = vmatprep.subr.bf16.mxu0 %v1616
    %1993 = vmatpush1.bf16.msra.mxu0 %v1615
    %1994 = vmatprep.subr.bf16.mxu0 %v1622
    %1995 = vmatpush1.bf16.msra.mxu0 %v1621
    %1996 = vmatprep.subr.bf16.mxu0 %v1628
    %1997 = vmatpush1.bf16.msra.mxu0 %v1627
    %1998 = vmatprep.subr.bf16.mxu0 %v1634
    %1999 = vmatpush1.bf16.msra.mxu0 %v1633
    %2000 = vmatprep.subr.bf16.mxu0 %v1640
    %2001 = vmatpush1.bf16.msra.mxu0 %v1639
    %2002 = vmatprep.subr.bf16.mxu0 %v1646
    %2003 = vmatpush1.bf16.msra.mxu0 %v1645
    %2004 = vmatprep.subr.bf16.mxu0 %v1652
    %2005 = vmatpush1.bf16.msra.mxu0 %v1651
    %2006 = vmatprep.subr.bf16.mxu0 %v1658
    %2007 = vmatpush1.bf16.msra.mxu0 %v1657
    %2008 = vmatprep.subr.bf16.mxu0 %v1664
    %2009 = vmatpush1.bf16.msra.mxu0 %v1663
    %2010 = vmatprep.subr.bf16.mxu0 %v1670
    %2011 = vmatpush1.bf16.msra.mxu0 %v1669
    %2012 = vmatprep.mubr.bf16.mxu0 %v654
    %2013 = vmatmul.mubr.bf16.gmra.mrb[0].mxu0 %v653
    %v2014 = vpop.f32.mrb[0].mxu0
    %v2015 = vadd.f32 %v1902, %v2014
    %v2016 = vpop.f32.mrb[0].mxu0
    %v2017 = vadd.f32 %v1904, %v2016
    %v2018 = vpop.f32.mrb[0].mxu0
    %v2019 = vadd.f32 %v1906, %v2018
    %v2020 = vpop.f32.mrb[0].mxu0
    %v2021 = vadd.f32 %v1908, %v2020
    %2022 = vmatprep.mubr.bf16.mxu0 %v658
    %2023 = vmatmul.mubr.bf16.gmra.mrb[0].mxu0 %v657
    %v2024 = vpop.f32.mrb[0].mxu0
    %v2025 = vadd.f32 %v1912, %v2024
    %v2026 = vpop.f32.mrb[0].mxu0
    %v2027 = vadd.f32 %v1914, %v2026
    %v2028 = vpop.f32.mrb[0].mxu0
    %v2029 = vadd.f32 %v1916, %v2028
    %v2030 = vpop.f32.mrb[0].mxu0
    %v2031 = vadd.f32 %v1918, %v2030
    %2032 = vmatprep.mubr.bf16.mxu0 %v662
    %2033 = vmatmul.mubr.bf16.gmra.mrb[0].mxu0 %v661
    %v2034 = vpop.f32.mrb[0].mxu0
    %v2035 = vadd.f32 %v1922, %v2034
    %v2036 = vpop.f32.mrb[0].mxu0
    %v2037 = vadd.f32 %v1924, %v2036
    %v2038 = vpop.f32.mrb[0].mxu0
    %v2039 = vadd.f32 %v1926, %v2038
    %v2040 = vpop.f32.mrb[0].mxu0
    %v2041 = vadd.f32 %v1928, %v2040
    %2042 = vmatprep.mubr.bf16.mxu0 %v666
    %2043 = vmatmul.mubr.bf16.gmra.mrb[0].mxu0 %v665
    %v2044 = vpop.f32.mrb[0].mxu0
    %v2045 = vadd.f32 %v1932, %v2044
    %v2046 = vpop.f32.mrb[0].mxu0
    %v2047 = vadd.f32 %v1934, %v2046
    %v2048 = vpop.f32.mrb[0].mxu0
    %v2049 = vadd.f32 %v1936, %v2048
    %v2050 = vpop.f32.mrb[0].mxu0
    %v2051 = vadd.f32 %v1938, %v2050
    %2052 = vmatprep.mubr.bf16.mxu0 %v670
    %2053 = vmatmul.mubr.bf16.gmra.mrb[0].mxu0 %v669
    %v2054 = vpop.f32.mrb[0].mxu0
    %v2055 = vadd.f32 %v1942, %v2054
    %v2056 = vpop.f32.mrb[0].mxu0
    %v2057 = vadd.f32 %v1944, %v2056
    %v2058 = vpop.f32.mrb[0].mxu0
    %v2059 = vadd.f32 %v1946, %v2058
    %v2060 = vpop.f32.mrb[0].mxu0
    %v2061 = vadd.f32 %v1948, %v2060
    %2062 = vmatprep.mubr.bf16.mxu0 %v674
    %2063 = vmatmul.mubr.bf16.gmra.mrb[0].mxu0 %v673
    %v2064 = vpop.f32.mrb[0].mxu0
    %v2065 = vadd.f32 %v1952, %v2064
    %v2066 = vpop.f32.mrb[0].mxu0
    %v2067 = vadd.f32 %v1954, %v2066
    %v2068 = vpop.f32.mrb[0].mxu0
    %v2069 = vadd.f32 %v1956, %v2068
    %v2070 = vpop.f32.mrb[0].mxu0
    %v2071 = vadd.f32 %v1958, %v2070
    %2072 = vmatprep.mubr.bf16.mxu0 %v678
    %2073 = vmatmul.mubr.bf16.gmra.mrb[0].mxu0 %v677
    %v2074 = vpop.f32.mrb[0].mxu0
    %v2075 = vadd.f32 %v1962, %v2074
    %v2076 = vpop.f32.mrb[0].mxu0
    %v2077 = vadd.f32 %v1964, %v2076
    %v2078 = vpop.f32.mrb[0].mxu0
    %v2079 = vadd.f32 %v1966, %v2078
    %v2080 = vpop.f32.mrb[0].mxu0
    %v2081 = vadd.f32 %v1968, %v2080
    %2082 = vmatprep.mubr.bf16.mxu0 %v682
    %2083 = vmatmul.mubr.bf16.gmra.mrb[0].mxu0 %v681
    %v2084 = vpop.f32.mrb[0].mxu0
    %v2085 = vadd.f32 %v1972, %v2084
    %v2086 = vpop.f32.mrb[0].mxu0
    %v2087 = vadd.f32 %v1974, %v2086
    %v2088 = vpop.f32.mrb[0].mxu0
    %v2089 = vadd.f32 %v1976, %v2088
    %v2090 = vpop.f32.mrb[0].mxu0
    %v2091 = vadd.f32 %v1978, %v2090
    %2092 = vdwg.mxu0
    %2093 = vmatprep.subr.bf16.mxu0 %v1486
    %2094 = vmatpush1.bf16.msra.mxu0 %v1485
    %2095 = vmatprep.subr.bf16.mxu0 %v1492
    %2096 = vmatpush1.bf16.msra.mxu0 %v1491
    %2097 = vmatprep.subr.bf16.mxu0 %v1498
    %2098 = vmatpush1.bf16.msra.mxu0 %v1497
    %2099 = vmatprep.subr.bf16.mxu0 %v1504
    %2100 = vmatpush1.bf16.msra.mxu0 %v1503
    %2101 = vmatprep.subr.bf16.mxu0 %v1510
    %2102 = vmatpush1.bf16.msra.mxu0 %v1509
    %2103 = vmatprep.subr.bf16.mxu0 %v1516
    %2104 = vmatpush1.bf16.msra.mxu0 %v1515
    %2105 = vmatprep.subr.bf16.mxu0 %v1522
    %2106 = vmatpush1.bf16.msra.mxu0 %v1521
    %2107 = vmatprep.subr.bf16.mxu0 %v1528
    %2108 = vmatpush1.bf16.msra.mxu0 %v1527
    %2109 = vmatprep.subr.bf16.mxu0 %v1534
    %2110 = vmatpush1.bf16.msra.mxu0 %v1533
    %2111 = vmatprep.subr.bf16.mxu0 %v1540
    %2112 = vmatpush1.bf16.msra.mxu0 %v1539
    %2113 = vmatprep.subr.bf16.mxu0 %v1546
    %2114 = vmatpush1.bf16.msra.mxu0 %v1545
    %2115 = vmatprep.subr.bf16.mxu0 %v1552
    %2116 = vmatpush1.bf16.msra.mxu0 %v1551
    %2117 = vmatprep.subr.bf16.mxu0 %v1558
    %2118 = vmatpush1.bf16.msra.mxu0 %v1557
    %2119 = vmatprep.subr.bf16.mxu0 %v1564
    %2120 = vmatpush1.bf16.msra.mxu0 %v1563
    %2121 = vmatprep.subr.bf16.mxu0 %v1570
    %2122 = vmatpush1.bf16.msra.mxu0 %v1569
    %2123 = vmatprep.subr.bf16.mxu0 %v1576
    %2124 = vmatpush1.bf16.msra.mxu0 %v1575
    %2125 = vmatprep.mubr.bf16.mxu0 %v652
    %2126 = vmatmul.mubr.bf16.gmra.mrb[0].mxu0 %v651
    %v2127 = vpop.f32.mrb[0].mxu0
    %v2128 = vadd.f32 %v888, %v2127
    %v2129 = vpop.f32.mrb[0].mxu0
    %v2130 = vadd.f32 %v892, %v2129
    %v2131 = vpop.f32.mrb[0].mxu0
    %v2132 = vadd.f32 %v888, %v2131
    %v2133 = vpop.f32.mrb[0].mxu0
    %v2134 = vadd.f32 %v892, %v2133
    %2135 = vmatprep.mubr.bf16.mxu0 %v656
    %2136 = vmatmul.mubr.bf16.gmra.mrb[0].mxu0 %v655
    %v2137 = vpop.f32.mrb[0].mxu0
    %v2138 = vadd.f32 %v888, %v2137
    %v2139 = vpop.f32.mrb[0].mxu0
    %v2140 = vadd.f32 %v892, %v2139
    %v2141 = vpop.f32.mrb[0].mxu0
    %v2142 = vadd.f32 %v888, %v2141
    %v2143 = vpop.f32.mrb[0].mxu0
    %v2144 = vadd.f32 %v892, %v2143
    %2145 = vmatprep.mubr.bf16.mxu0 %v660
    %2146 = vmatmul.mubr.bf16.gmra.mrb[0].mxu0 %v659
    %v2147 = vpop.f32.mrb[0].mxu0
    %v2148 = vadd.f32 %v888, %v2147
    %v2149 = vpop.f32.mrb[0].mxu0
    %v2150 = vadd.f32 %v892, %v2149
    %v2151 = vpop.f32.mrb[0].mxu0
    %v2152 = vadd.f32 %v888, %v2151
    %v2153 = vpop.f32.mrb[0].mxu0
    %v2154 = vadd.f32 %v892, %v2153
    %2155 = vmatprep.mubr.bf16.mxu0 %v664
    %2156 = vmatmul.mubr.bf16.gmra.mrb[0].mxu0 %v663
    %v2157 = vpop.f32.mrb[0].mxu0
    %v2158 = vadd.f32 %v888, %v2157
    %v2159 = vpop.f32.mrb[0].mxu0
    %v2160 = vadd.f32 %v892, %v2159
    %v2161 = vpop.f32.mrb[0].mxu0
    %v2162 = vadd.f32 %v888, %v2161
    %v2163 = vpop.f32.mrb[0].mxu0
    %v2164 = vadd.f32 %v892, %v2163
    %2165 = vmatprep.mubr.bf16.mxu0 %v668
    %2166 = vmatmul.mubr.bf16.gmra.mrb[0].mxu0 %v667
    %v2167 = vpop.f32.mrb[0].mxu0
    %v2168 = vadd.f32 %v888, %v2167
    %v2169 = vpop.f32.mrb[0].mxu0
    %v2170 = vadd.f32 %v892, %v2169
    %v2171 = vpop.f32.mrb[0].mxu0
    %v2172 = vadd.f32 %v888, %v2171
    %v2173 = vpop.f32.mrb[0].mxu0
    %v2174 = vadd.f32 %v892, %v2173
    %2175 = vmatprep.mubr.bf16.mxu0 %v672
    %2176 = vmatmul.mubr.bf16.gmra.mrb[0].mxu0 %v671
    %v2177 = vpop.f32.mrb[0].mxu0
    %v2178 = vadd.f32 %v888, %v2177
    %v2179 = vpop.f32.mrb[0].mxu0
    %v2180 = vadd.f32 %v892, %v2179
    %v2181 = vpop.f32.mrb[0].mxu0
    %v2182 = vadd.f32 %v888, %v2181
    %v2183 = vpop.f32.mrb[0].mxu0
    %v2184 = vadd.f32 %v892, %v2183
    %2185 = vmatprep.mubr.bf16.mxu0 %v676
    %2186 = vmatmul.mubr.bf16.gmra.mrb[0].mxu0 %v675
    %v2187 = vpop.f32.mrb[0].mxu0
    %v2188 = vadd.f32 %v888, %v2187
    %v2189 = vpop.f32.mrb[0].mxu0
    %v2190 = vadd.f32 %v892, %v2189
    %v2191 = vpop.f32.mrb[0].mxu0
    %v2192 = vadd.f32 %v888, %v2191
    %v2193 = vpop.f32.mrb[0].mxu0
    %v2194 = vadd.f32 %v892, %v2193
    %2195 = vmatprep.mubr.bf16.mxu0 %v680
    %2196 = vmatmul.mubr.bf16.gmra.mrb[0].mxu0 %v679
    %v2197 = vpop.f32.mrb[0].mxu0
    %v2198 = vadd.f32 %v888, %v2197
    %v2199 = vpop.f32.mrb[0].mxu0
    %v2200 = vadd.f32 %v892, %v2199
    %v2201 = vpop.f32.mrb[0].mxu0
    %v2202 = vadd.f32 %v888, %v2201
    %v2203 = vpop.f32.mrb[0].mxu0
    %v2204 = vadd.f32 %v892, %v2203
    %2205 = vdwg.mxu0
    %2206 = vmatprep.subr.bf16.mxu0 %v1582
    %2207 = vmatpush1.bf16.msra.mxu0 %v1581
    %2208 = vmatprep.subr.bf16.mxu0 %v1588
    %2209 = vmatpush1.bf16.msra.mxu0 %v1587
    %2210 = vmatprep.subr.bf16.mxu0 %v1594
    %2211 = vmatpush1.bf16.msra.mxu0 %v1593
    %2212 = vmatprep.subr.bf16.mxu0 %v1600
    %2213 = vmatpush1.bf16.msra.mxu0 %v1599
    %2214 = vmatprep.subr.bf16.mxu0 %v1606
    %2215 = vmatpush1.bf16.msra.mxu0 %v1605
    %2216 = vmatprep.subr.bf16.mxu0 %v1612
    %2217 = vmatpush1.bf16.msra.mxu0 %v1611
    %2218 = vmatprep.subr.bf16.mxu0 %v1618
    %2219 = vmatpush1.bf16.msra.mxu0 %v1617
    %2220 = vmatprep.subr.bf16.mxu0 %v1624
    %2221 = vmatpush1.bf16.msra.mxu0 %v1623
    %2222 = vmatprep.subr.bf16.mxu0 %v1630
    %2223 = vmatpush1.bf16.msra.mxu0 %v1629
    %2224 = vmatprep.subr.bf16.mxu0 %v1636
    %2225 = vmatpush1.bf16.msra.mxu0 %v1635
    %2226 = vmatprep.subr.bf16.mxu0 %v1642
    %2227 = vmatpush1.bf16.msra.mxu0 %v1641
    %2228 = vmatprep.subr.bf16.mxu0 %v1648
    %2229 = vmatpush1.bf16.msra.mxu0 %v1647
    %2230 = vmatprep.subr.bf16.mxu0 %v1654
    %2231 = vmatpush1.bf16.msra.mxu0 %v1653
    %2232 = vmatprep.subr.bf16.mxu0 %v1660
    %2233 = vmatpush1.bf16.msra.mxu0 %v1659
    %2234 = vmatprep.subr.bf16.mxu0 %v1666
    %2235 = vmatpush1.bf16.msra.mxu0 %v1665
    %2236 = vmatprep.subr.bf16.mxu0 %v1672
    %2237 = vmatpush1.bf16.msra.mxu0 %v1671
    %2238 = vmatprep.mubr.bf16.mxu0 %v654
    %2239 = vmatmul.mubr.bf16.gmra.mrb[0].mxu0 %v653
    %v2240 = vpop.f32.mrb[0].mxu0
    %v2241 = vadd.f32 %v2128, %v2240
    %v2242 = vpop.f32.mrb[0].mxu0
    %v2243 = vadd.f32 %v2130, %v2242
    %v2244 = vpop.f32.mrb[0].mxu0
    %v2245 = vadd.f32 %v2132, %v2244
    %v2246 = vpop.f32.mrb[0].mxu0
    %v2247 = vadd.f32 %v2134, %v2246
    %2248 = vmatprep.mubr.bf16.mxu0 %v658
    %2249 = vmatmul.mubr.bf16.gmra.mrb[0].mxu0 %v657
    %v2250 = vpop.f32.mrb[0].mxu0
    %v2251 = vadd.f32 %v2138, %v2250
    %v2252 = vpop.f32.mrb[0].mxu0
    %v2253 = vadd.f32 %v2140, %v2252
    %v2254 = vpop.f32.mrb[0].mxu0
    %v2255 = vadd.f32 %v2142, %v2254
    %v2256 = vpop.f32.mrb[0].mxu0
    %v2257 = vadd.f32 %v2144, %v2256
    %2258 = vmatprep.mubr.bf16.mxu0 %v662
    %2259 = vmatmul.mubr.bf16.gmra.mrb[0].mxu0 %v661
    %v2260 = vpop.f32.mrb[0].mxu0
    %v2261 = vadd.f32 %v2148, %v2260
    %v2262 = vpop.f32.mrb[0].mxu0
    %v2263 = vadd.f32 %v2150, %v2262
    %v2264 = vpop.f32.mrb[0].mxu0
    %v2265 = vadd.f32 %v2152, %v2264
    %v2266 = vpop.f32.mrb[0].mxu0
    %v2267 = vadd.f32 %v2154, %v2266
    %2268 = vmatprep.mubr.bf16.mxu0 %v666
    %2269 = vmatmul.mubr.bf16.gmra.mrb[0].mxu0 %v665
    %v2270 = vpop.f32.mrb[0].mxu0
    %v2271 = vadd.f32 %v2158, %v2270
    %v2272 = vpop.f32.mrb[0].mxu0
    %v2273 = vadd.f32 %v2160, %v2272
    %v2274 = vpop.f32.mrb[0].mxu0
    %v2275 = vadd.f32 %v2162, %v2274
    %v2276 = vpop.f32.mrb[0].mxu0
    %v2277 = vadd.f32 %v2164, %v2276
    %2278 = vmatprep.mubr.bf16.mxu0 %v670
    %2279 = vmatmul.mubr.bf16.gmra.mrb[0].mxu0 %v669
    %v2280 = vpop.f32.mrb[0].mxu0
    %v2281 = vadd.f32 %v2168, %v2280
    %v2282 = vpop.f32.mrb[0].mxu0
    %v2283 = vadd.f32 %v2170, %v2282
    %v2284 = vpop.f32.mrb[0].mxu0
    %v2285 = vadd.f32 %v2172, %v2284
    %v2286 = vpop.f32.mrb[0].mxu0
    %v2287 = vadd.f32 %v2174, %v2286
    %2288 = vmatprep.mubr.bf16.mxu0 %v674
    %2289 = vmatmul.mubr.bf16.gmra.mrb[0].mxu0 %v673
    %v2290 = vpop.f32.mrb[0].mxu0
    %v2291 = vadd.f32 %v2178, %v2290
    %v2292 = vpop.f32.mrb[0].mxu0
    %v2293 = vadd.f32 %v2180, %v2292
    %v2294 = vpop.f32.mrb[0].mxu0
    %v2295 = vadd.f32 %v2182, %v2294
    %v2296 = vpop.f32.mrb[0].mxu0
    %v2297 = vadd.f32 %v2184, %v2296
    %2298 = vmatprep.mubr.bf16.mxu0 %v678
    %2299 = vmatmul.mubr.bf16.gmra.mrb[0].mxu0 %v677
    %v2300 = vpop.f32.mrb[0].mxu0
    %v2301 = vadd.f32 %v2188, %v2300
    %v2302 = vpop.f32.mrb[0].mxu0
    %v2303 = vadd.f32 %v2190, %v2302
    %v2304 = vpop.f32.mrb[0].mxu0
    %v2305 = vadd.f32 %v2192, %v2304
    %v2306 = vpop.f32.mrb[0].mxu0
    %v2307 = vadd.f32 %v2194, %v2306
    %2308 = vmatprep.mubr.bf16.mxu0 %v682
    %2309 = vmatmul.mubr.bf16.gmra.mrb[0].mxu0 %v681
    %v2310 = vpop.f32.mrb[0].mxu0
    %v2311 = vadd.f32 %v2198, %v2310
    %v2312 = vpop.f32.mrb[0].mxu0
    %v2313 = vadd.f32 %v2200, %v2312
    %v2314 = vpop.f32.mrb[0].mxu0
    %v2315 = vadd.f32 %v2202, %v2314
    %v2316 = vpop.f32.mrb[0].mxu0
    %v2317 = vadd.f32 %v2204, %v2316
    %2318 = vdwg.mxu0
    %2319 = vmatprep.subr.bf16.mxu0 %v1488
    %2320 = vmatpush1.bf16.msra.mxu0 %v1487
    %2321 = vmatprep.subr.bf16.mxu0 %v1494
    %2322 = vmatpush1.bf16.msra.mxu0 %v1493
    %2323 = vmatprep.subr.bf16.mxu0 %v1500
    %2324 = vmatpush1.bf16.msra.mxu0 %v1499
    %2325 = vmatprep.subr.bf16.mxu0 %v1506
    %2326 = vmatpush1.bf16.msra.mxu0 %v1505
    %2327 = vmatprep.subr.bf16.mxu0 %v1512
    %2328 = vmatpush1.bf16.msra.mxu0 %v1511
    %2329 = vmatprep.subr.bf16.mxu0 %v1518
    %2330 = vmatpush1.bf16.msra.mxu0 %v1517
    %2331 = vmatprep.subr.bf16.mxu0 %v1524
    %2332 = vmatpush1.bf16.msra.mxu0 %v1523
    %2333 = vmatprep.subr.bf16.mxu0 %v1530
    %2334 = vmatpush1.bf16.msra.mxu0 %v1529
    %2335 = vmatprep.subr.bf16.mxu0 %v1536
    %2336 = vmatpush1.bf16.msra.mxu0 %v1535
    %2337 = vmatprep.subr.bf16.mxu0 %v1542
    %2338 = vmatpush1.bf16.msra.mxu0 %v1541
    %2339 = vmatprep.subr.bf16.mxu0 %v1548
    %2340 = vmatpush1.bf16.msra.mxu0 %v1547
    %2341 = vmatprep.subr.bf16.mxu0 %v1554
    %2342 = vmatpush1.bf16.msra.mxu0 %v1553
    %2343 = vmatprep.subr.bf16.mxu0 %v1560
    %2344 = vmatpush1.bf16.msra.mxu0 %v1559
    %2345 = vmatprep.subr.bf16.mxu0 %v1566
    %2346 = vmatpush1.bf16.msra.mxu0 %v1565
    %2347 = vmatprep.subr.bf16.mxu0 %v1572
    %2348 = vmatpush1.bf16.msra.mxu0 %v1571
    %2349 = vmatprep.subr.bf16.mxu0 %v1578
    %2350 = vmatpush1.bf16.msra.mxu0 %v1577
    %2351 = vmatprep.mubr.bf16.mxu0 %v652
    %2352 = vmatmul.mubr.bf16.gmra.mrb[0].mxu0 %v651
    %v2353 = vpop.f32.mrb[0].mxu0
    %v2354 = vadd.f32 %v896, %v2353
    %v2355 = vpop.f32.mrb[0].mxu0
    %v2356 = vadd.f32 %v900, %v2355
    %v2357 = vpop.f32.mrb[0].mxu0
    %v2358 = vadd.f32 %v896, %v2357
    %v2359 = vpop.f32.mrb[0].mxu0
    %v2360 = vadd.f32 %v900, %v2359
    %2361 = vmatprep.mubr.bf16.mxu0 %v656
    %2362 = vmatmul.mubr.bf16.gmra.mrb[0].mxu0 %v655
    %v2363 = vpop.f32.mrb[0].mxu0
    %v2364 = vadd.f32 %v896, %v2363
    %v2365 = vpop.f32.mrb[0].mxu0
    %v2366 = vadd.f32 %v900, %v2365
    %v2367 = vpop.f32.mrb[0].mxu0
    %v2368 = vadd.f32 %v896, %v2367
    %v2369 = vpop.f32.mrb[0].mxu0
    %v2370 = vadd.f32 %v900, %v2369
    %2371 = vmatprep.mubr.bf16.mxu0 %v660
    %2372 = vmatmul.mubr.bf16.gmra.mrb[0].mxu0 %v659
    %v2373 = vpop.f32.mrb[0].mxu0
    %v2374 = vadd.f32 %v896, %v2373
    %v2375 = vpop.f32.mrb[0].mxu0
    %v2376 = vadd.f32 %v900, %v2375
    %v2377 = vpop.f32.mrb[0].mxu0
    %v2378 = vadd.f32 %v896, %v2377
    %v2379 = vpop.f32.mrb[0].mxu0
    %v2380 = vadd.f32 %v900, %v2379
    %2381 = vmatprep.mubr.bf16.mxu0 %v664
    %2382 = vmatmul.mubr.bf16.gmra.mrb[0].mxu0 %v663
    %v2383 = vpop.f32.mrb[0].mxu0
    %v2384 = vadd.f32 %v896, %v2383
    %v2385 = vpop.f32.mrb[0].mxu0
    %v2386 = vadd.f32 %v900, %v2385
    %v2387 = vpop.f32.mrb[0].mxu0
    %v2388 = vadd.f32 %v896, %v2387
    %v2389 = vpop.f32.mrb[0].mxu0
    %v2390 = vadd.f32 %v900, %v2389
    %2391 = vmatprep.mubr.bf16.mxu0 %v668
    %2392 = vmatmul.mubr.bf16.gmra.mrb[0].mxu0 %v667
    %v2393 = vpop.f32.mrb[0].mxu0
    %v2394 = vadd.f32 %v896, %v2393
    %v2395 = vpop.f32.mrb[0].mxu0
    %v2396 = vadd.f32 %v900, %v2395
    %v2397 = vpop.f32.mrb[0].mxu0
    %v2398 = vadd.f32 %v896, %v2397
    %v2399 = vpop.f32.mrb[0].mxu0
    %v2400 = vadd.f32 %v900, %v2399
    %2401 = vmatprep.mubr.bf16.mxu0 %v672
    %2402 = vmatmul.mubr.bf16.gmra.mrb[0].mxu0 %v671
    %v2403 = vpop.f32.mrb[0].mxu0
    %v2404 = vadd.f32 %v896, %v2403
    %v2405 = vpop.f32.mrb[0].mxu0
    %v2406 = vadd.f32 %v900, %v2405
    %v2407 = vpop.f32.mrb[0].mxu0
    %v2408 = vadd.f32 %v896, %v2407
    %v2409 = vpop.f32.mrb[0].mxu0
    %v2410 = vadd.f32 %v900, %v2409
    %2411 = vmatprep.mubr.bf16.mxu0 %v676
    %2412 = vmatmul.mubr.bf16.gmra.mrb[0].mxu0 %v675
    %v2413 = vpop.f32.mrb[0].mxu0
    %v2414 = vadd.f32 %v896, %v2413
    %v2415 = vpop.f32.mrb[0].mxu0
    %v2416 = vadd.f32 %v900, %v2415
    %v2417 = vpop.f32.mrb[0].mxu0
    %v2418 = vadd.f32 %v896, %v2417
    %v2419 = vpop.f32.mrb[0].mxu0
    %v2420 = vadd.f32 %v900, %v2419
    %2421 = vmatprep.mubr.bf16.mxu0 %v680
    %2422 = vmatmul.mubr.bf16.gmra.mrb[0].mxu0 %v679
    %v2423 = vpop.f32.mrb[0].mxu0
    %v2424 = vadd.f32 %v896, %v2423
    %v2425 = vpop.f32.mrb[0].mxu0
    %v2426 = vadd.f32 %v900, %v2425
    %v2427 = vpop.f32.mrb[0].mxu0
    %v2428 = vadd.f32 %v896, %v2427
    %v2429 = vpop.f32.mrb[0].mxu0
    %v2430 = vadd.f32 %v900, %v2429
    %2431 = vdwg.mxu0
    %2432 = vmatprep.subr.bf16.mxu0 %v1584
    %2433 = vmatpush1.bf16.msra.mxu0 %v1583
    %2434 = vmatprep.subr.bf16.mxu0 %v1590
    %2435 = vmatpush1.bf16.msra.mxu0 %v1589
    %2436 = vmatprep.subr.bf16.mxu0 %v1596
    %2437 = vmatpush1.bf16.msra.mxu0 %v1595
    %2438 = vmatprep.subr.bf16.mxu0 %v1602
    %2439 = vmatpush1.bf16.msra.mxu0 %v1601
    %2440 = vmatprep.subr.bf16.mxu0 %v1608
    %2441 = vmatpush1.bf16.msra.mxu0 %v1607
    %2442 = vmatprep.subr.bf16.mxu0 %v1614
    %2443 = vmatpush1.bf16.msra.mxu0 %v1613
    %2444 = vmatprep.subr.bf16.mxu0 %v1620
    %2445 = vmatpush1.bf16.msra.mxu0 %v1619
    %2446 = vmatprep.subr.bf16.mxu0 %v1626
    %2447 = vmatpush1.bf16.msra.mxu0 %v1625
    %2448 = vmatprep.subr.bf16.mxu0 %v1632
    %2449 = vmatpush1.bf16.msra.mxu0 %v1631
    %2450 = vmatprep.subr.bf16.mxu0 %v1638
    %2451 = vmatpush1.bf16.msra.mxu0 %v1637
    %2452 = vmatprep.subr.bf16.mxu0 %v1644
    %2453 = vmatpush1.bf16.msra.mxu0 %v1643
    %2454 = vmatprep.subr.bf16.mxu0 %v1650
    %2455 = vmatpush1.bf16.msra.mxu0 %v1649
    %2456 = vmatprep.subr.bf16.mxu0 %v1656
    %2457 = vmatpush1.bf16.msra.mxu0 %v1655
    %2458 = vmatprep.subr.bf16.mxu0 %v1662
    %2459 = vmatpush1.bf16.msra.mxu0 %v1661
    %2460 = vmatprep.subr.bf16.mxu0 %v1668
    %2461 = vmatpush1.bf16.msra.mxu0 %v1667
    %2462 = vmatprep.subr.bf16.mxu0 %v1674
    %2463 = vmatpush1.bf16.msra.mxu0 %v1673
    %2464 = vmatprep.mubr.bf16.mxu0 %v654
    %2465 = vmatmul.mubr.bf16.gmra.mrb[0].mxu0 %v653
    %v2466 = vpop.f32.mrb[0].mxu0
    %v2467 = vadd.f32 %v2354, %v2466
    %v2468 = vpop.f32.mrb[0].mxu0
    %v2469 = vadd.f32 %v2356, %v2468
    %v2470 = vpop.f32.mrb[0].mxu0
    %v2471 = vadd.f32 %v2358, %v2470
    %v2472 = vpop.f32.mrb[0].mxu0
    %v2473 = vadd.f32 %v2360, %v2472
    %2474 = vmatprep.mubr.bf16.mxu0 %v658
    %2475 = vmatmul.mubr.bf16.gmra.mrb[0].mxu0 %v657
    %v2476 = vpop.f32.mrb[0].mxu0
    %v2477 = vadd.f32 %v2364, %v2476
    %v2478 = vpop.f32.mrb[0].mxu0
    %v2479 = vadd.f32 %v2366, %v2478
    %v2480 = vpop.f32.mrb[0].mxu0
    %v2481 = vadd.f32 %v2368, %v2480
    %v2482 = vpop.f32.mrb[0].mxu0
    %v2483 = vadd.f32 %v2370, %v2482
    %2484 = vmatprep.mubr.bf16.mxu0 %v662
    %2485 = vmatmul.mubr.bf16.gmra.mrb[0].mxu0 %v661
    %v2486 = vpop.f32.mrb[0].mxu0
    %v2487 = vadd.f32 %v2374, %v2486
    %v2488 = vpop.f32.mrb[0].mxu0
    %v2489 = vadd.f32 %v2376, %v2488
    %v2490 = vpop.f32.mrb[0].mxu0
    %v2491 = vadd.f32 %v2378, %v2490
    %v2492 = vpop.f32.mrb[0].mxu0
    %v2493 = vadd.f32 %v2380, %v2492
    %2494 = vmatprep.mubr.bf16.mxu0 %v666
    %2495 = vmatmul.mubr.bf16.gmra.mrb[0].mxu0 %v665
    %v2496 = vpop.f32.mrb[0].mxu0
    %v2497 = vadd.f32 %v2384, %v2496
    %v2498 = vpop.f32.mrb[0].mxu0
    %v2499 = vadd.f32 %v2386, %v2498
    %v2500 = vpop.f32.mrb[0].mxu0
    %v2501 = vadd.f32 %v2388, %v2500
    %v2502 = vpop.f32.mrb[0].mxu0
    %v2503 = vadd.f32 %v2390, %v2502
    %2504 = vmatprep.mubr.bf16.mxu0 %v670
    %2505 = vmatmul.mubr.bf16.gmra.mrb[0].mxu0 %v669
    %v2506 = vpop.f32.mrb[0].mxu0
    %v2507 = vadd.f32 %v2394, %v2506
    %v2508 = vpop.f32.mrb[0].mxu0
    %v2509 = vadd.f32 %v2396, %v2508
    %v2510 = vpop.f32.mrb[0].mxu0
    %v2511 = vadd.f32 %v2398, %v2510
    %v2512 = vpop.f32.mrb[0].mxu0
    %v2513 = vadd.f32 %v2400, %v2512
    %2514 = vmatprep.mubr.bf16.mxu0 %v674
    %2515 = vmatmul.mubr.bf16.gmra.mrb[0].mxu0 %v673
    %v2516 = vpop.f32.mrb[0].mxu0
    %v2517 = vadd.f32 %v2404, %v2516
    %v2518 = vpop.f32.mrb[0].mxu0
    %v2519 = vadd.f32 %v2406, %v2518
    %v2520 = vpop.f32.mrb[0].mxu0
    %v2521 = vadd.f32 %v2408, %v2520
    %v2522 = vpop.f32.mrb[0].mxu0
    %v2523 = vadd.f32 %v2410, %v2522
    %2524 = vmatprep.mubr.bf16.mxu0 %v678
    %2525 = vmatmul.mubr.bf16.gmra.mrb[0].mxu0 %v677
    %v2526 = vpop.f32.mrb[0].mxu0
    %v2527 = vadd.f32 %v2414, %v2526
    %v2528 = vpop.f32.mrb[0].mxu0
    %v2529 = vadd.f32 %v2416, %v2528
    %v2530 = vpop.f32.mrb[0].mxu0
    %v2531 = vadd.f32 %v2418, %v2530
    %v2532 = vpop.f32.mrb[0].mxu0
    %v2533 = vadd.f32 %v2420, %v2532
    %2534 = vmatprep.mubr.bf16.mxu0 %v682
    %2535 = vmatmul.mubr.bf16.gmra.mrb[0].mxu0 %v681
    %v2536 = vpop.f32.mrb[0].mxu0
    %v2537 = vadd.f32 %v2424, %v2536
    %v2538 = vpop.f32.mrb[0].mxu0
    %v2539 = vadd.f32 %v2426, %v2538
    %v2540 = vpop.f32.mrb[0].mxu0
    %v2541 = vadd.f32 %v2428, %v2540
    %v2542 = vpop.f32.mrb[0].mxu0
    %v2543 = vadd.f32 %v2430, %v2542
    %2544 = vdwg.mxu0
    %v2545 = vmax.f32 %v2015, 0.0
    %v2546 = vmax.f32 %v2017, 0.0
    %v2547 = vmax.f32 %v2241, 0.0
    %v2548 = vmax.f32 %v2243, 0.0
    %v2549 = vmax.f32 %v2467, 0.0
    %v2550 = vmax.f32 %v2469, 0.0
    %v2551 = vmax.f32 %v2019, 0.0
    %v2552 = vmax.f32 %v2021, 0.0
    %v2553 = vmax.f32 %v2245, 0.0
    %v2554 = vmax.f32 %v2247, 0.0
    %v2555 = vmax.f32 %v2471, 0.0
    %v2556 = vmax.f32 %v2473, 0.0
    %v2557 = vmax.f32 %v2025, 0.0
    %v2558 = vmax.f32 %v2027, 0.0
    %v2559 = vmax.f32 %v2251, 0.0
    %v2560 = vmax.f32 %v2253, 0.0
    %v2561 = vmax.f32 %v2477, 0.0
    %v2562 = vmax.f32 %v2479, 0.0
    %v2563 = vmax.f32 %v2029, 0.0
    %v2564 = vmax.f32 %v2031, 0.0
    %v2565 = vmax.f32 %v2255, 0.0
    %v2566 = vmax.f32 %v2257, 0.0
    %v2567 = vmax.f32 %v2481, 0.0
    %v2568 = vmax.f32 %v2483, 0.0
    %v2569 = vmax.f32 %v2035, 0.0
    %v2570 = vmax.f32 %v2037, 0.0
    %v2571 = vmax.f32 %v2261, 0.0
    %v2572 = vmax.f32 %v2263, 0.0
    %v2573 = vmax.f32 %v2487, 0.0
    %v2574 = vmax.f32 %v2489, 0.0
    %v2575 = vmax.f32 %v2039, 0.0
    %v2576 = vmax.f32 %v2041, 0.0
    %v2577 = vmax.f32 %v2265, 0.0
    %v2578 = vmax.f32 %v2267, 0.0
    %v2579 = vmax.f32 %v2491, 0.0
    %v2580 = vmax.f32 %v2493, 0.0
    %v2581 = vmax.f32 %v2045, 0.0
    %v2582 = vmax.f32 %v2047, 0.0
    %v2583 = vmax.f32 %v2271, 0.0
    %v2584 = vmax.f32 %v2273, 0.0
    %v2585 = vmax.f32 %v2497, 0.0
    %v2586 = vmax.f32 %v2499, 0.0
    %v2587 = vmax.f32 %v2049, 0.0
    %v2588 = vmax.f32 %v2051, 0.0
    %v2589 = vmax.f32 %v2275, 0.0
    %v2590 = vmax.f32 %v2277, 0.0
    %v2591 = vmax.f32 %v2501, 0.0
    %v2592 = vmax.f32 %v2503, 0.0
    %v2593 = vmax.f32 %v2055, 0.0
    %v2594 = vmax.f32 %v2057, 0.0
    %v2595 = vmax.f32 %v2281, 0.0
    %v2596 = vmax.f32 %v2283, 0.0
    %v2597 = vmax.f32 %v2507, 0.0
    %v2598 = vmax.f32 %v2509, 0.0
    %v2599 = vmax.f32 %v2059, 0.0
    %v2600 = vmax.f32 %v2061, 0.0
    %v2601 = vmax.f32 %v2285, 0.0
    %v2602 = vmax.f32 %v2287, 0.0
    %v2603 = vmax.f32 %v2511, 0.0
    %v2604 = vmax.f32 %v2513, 0.0
    %v2605 = vmax.f32 %v2065, 0.0
    %v2606 = vmax.f32 %v2067, 0.0
    %v2607 = vmax.f32 %v2291, 0.0
    %v2608 = vmax.f32 %v2293, 0.0
    %v2609 = vmax.f32 %v2517, 0.0
    %v2610 = vmax.f32 %v2519, 0.0
    %v2611 = vmax.f32 %v2069, 0.0
    %v2612 = vmax.f32 %v2071, 0.0
    %v2613 = vmax.f32 %v2295, 0.0
    %v2614 = vmax.f32 %v2297, 0.0
    %v2615 = vmax.f32 %v2521, 0.0
    %v2616 = vmax.f32 %v2523, 0.0
    %v2617 = vmax.f32 %v2075, 0.0
    %v2618 = vmax.f32 %v2077, 0.0
    %v2619 = vmax.f32 %v2301, 0.0
    %v2620 = vmax.f32 %v2303, 0.0
    %v2621 = vmax.f32 %v2527, 0.0
    %v2622 = vmax.f32 %v2529, 0.0
    %v2623 = vmax.f32 %v2079, 0.0
    %v2624 = vmax.f32 %v2081, 0.0
    %v2625 = vmax.f32 %v2305, 0.0
    %v2626 = vmax.f32 %v2307, 0.0
    %v2627 = vmax.f32 %v2531, 0.0
    %v2628 = vmax.f32 %v2533, 0.0
    %v2629 = vmax.f32 %v2085, 0.0
    %v2630 = vmax.f32 %v2087, 0.0
    %v2631 = vmax.f32 %v2311, 0.0
    %v2632 = vmax.f32 %v2313, 0.0
    %v2633 = vmax.f32 %v2537, 0.0
    %v2634 = vmax.f32 %v2539, 0.0
    %v2635 = vmax.f32 %v2089, 0.0
    %v2636 = vmax.f32 %v2091, 0.0
    %v2637 = vmax.f32 %v2315, 0.0
    %v2638 = vmax.f32 %v2317, 0.0
    %v2639 = vmax.f32 %v2541, 0.0
    %v2640 = vmax.f32 %v2543, 0.0
    %v2641 = vpack.c.bf16 %v2551, %v2545
    %v2642 = vpack.c.bf16 %v2552, %v2546
    %v2643 = vpack.c.bf16 %v2553, %v2547
    %v2644 = vpack.c.bf16 %v2554, %v2548
    %v2645 = vpack.c.bf16 %v2555, %v2549
    %v2646 = vpack.c.bf16 %v2556, %v2550
    %v2647 = vpack.c.bf16 %v2563, %v2557
    %v2648 = vpack.c.bf16 %v2564, %v2558
    %v2649 = vpack.c.bf16 %v2565, %v2559
    %v2650 = vpack.c.bf16 %v2566, %v2560
    %v2651 = vpack.c.bf16 %v2567, %v2561
    %v2652 = vpack.c.bf16 %v2568, %v2562
    %v2653 = vpack.c.bf16 %v2575, %v2569
    %v2654 = vpack.c.bf16 %v2576, %v2570
    %v2655 = vpack.c.bf16 %v2577, %v2571
    %v2656 = vpack.c.bf16 %v2578, %v2572
    %v2657 = vpack.c.bf16 %v2579, %v2573
    %v2658 = vpack.c.bf16 %v2580, %v2574
    %v2659 = vpack.c.bf16 %v2587, %v2581
    %v2660 = vpack.c.bf16 %v2588, %v2582
    %v2661 = vpack.c.bf16 %v2589, %v2583
    %v2662 = vpack.c.bf16 %v2590, %v2584
    %v2663 = vpack.c.bf16 %v2591, %v2585
    %v2664 = vpack.c.bf16 %v2592, %v2586
    %v2665 = vpack.c.bf16 %v2599, %v2593
    %v2666 = vpack.c.bf16 %v2600, %v2594
    %v2667 = vpack.c.bf16 %v2601, %v2595
    %v2668 = vpack.c.bf16 %v2602, %v2596
    %v2669 = vpack.c.bf16 %v2603, %v2597
    %v2670 = vpack.c.bf16 %v2604, %v2598
    %v2671 = vpack.c.bf16 %v2611, %v2605
    %v2672 = vpack.c.bf16 %v2612, %v2606
    %v2673 = vpack.c.bf16 %v2613, %v2607
    %v2674 = vpack.c.bf16 %v2614, %v2608
    %v2675 = vpack.c.bf16 %v2615, %v2609
    %v2676 = vpack.c.bf16 %v2616, %v2610
    %v2677 = vpack.c.bf16 %v2623, %v2617
    %v2678 = vpack.c.bf16 %v2624, %v2618
    %v2679 = vpack.c.bf16 %v2625, %v2619
    %v2680 = vpack.c.bf16 %v2626, %v2620
    %v2681 = vpack.c.bf16 %v2627, %v2621
    %v2682 = vpack.c.bf16 %v2628, %v2622
    %v2683 = vpack.c.bf16 %v2635, %v2629
    %v2684 = vpack.c.bf16 %v2636, %v2630
    %v2685 = vpack.c.bf16 %v2637, %v2631
    %v2686 = vpack.c.bf16 %v2638, %v2632
    %v2687 = vpack.c.bf16 %v2639, %v2633
    %v2688 = vpack.c.bf16 %v2640, %v2634
    %v2689 = vld [vmem:[#allocation8] sm:$0xf]
    %v2690 = vld [vmem:[#allocation8 + $0x4] sm:$0xf]
    %v2691 = vld [vmem:[#allocation8 + $0x8] sm:$0xf]
    %v2692 = vld [vmem:[#allocation8 + $0xc] sm:$0xf]
    %v2693 = vld [vmem:[#allocation8 + $0x10] sm:$0xf]
    %v2694 = vld [vmem:[#allocation8 + $0x14] sm:$0xf]
    %v2695 = vld [vmem:[#allocation8 + $0x18] sm:$0xf]
    %v2696 = vld [vmem:[#allocation8 + $0x1c] sm:$0xf]
    %v2697 = vld [vmem:[#allocation8 + $0x20] sm:$0xf]
    %v2698 = vld [vmem:[#allocation8 + $0x24] sm:$0xf]
    %v2699 = vld [vmem:[#allocation8 + $0x28] sm:$0xf]
    %v2700 = vld [vmem:[#allocation8 + $0x2c] sm:$0xf]
    %v2701 = vld [vmem:[#allocation8 + $0x30] sm:$0xf]
    %v2702 = vld [vmem:[#allocation8 + $0x34] sm:$0xf]
    %v2703 = vld [vmem:[#allocation8 + $0x38] sm:$0xf]
    %v2704 = vld [vmem:[#allocation8 + $0x3c] sm:$0xf]
    %v2705 = vld [vmem:[#allocation8 + $0x40] sm:$0xf]
    %v2706 = vld [vmem:[#allocation8 + $0x44] sm:$0xf]
    %v2707 = vld [vmem:[#allocation8 + $0x48] sm:$0xf]
    %v2708 = vld [vmem:[#allocation8 + $0x4c] sm:$0xf]
    %v2709 = vld [vmem:[#allocation8 + $0x50] sm:$0xf]
    %v2710 = vld [vmem:[#allocation8 + $0x54] sm:$0xf]
    %v2711 = vld [vmem:[#allocation8 + $0x58] sm:$0xf]
    %v2712 = vld [vmem:[#allocation8 + $0x5c] sm:$0xf]
    %v2713 = vld [vmem:[#allocation8 + $0x60] sm:$0xf]
    %v2714 = vld [vmem:[#allocation8 + $0x64] sm:$0xf]
    %v2715 = vld [vmem:[#allocation8 + $0x68] sm:$0xf]
    %v2716 = vld [vmem:[#allocation8 + $0x6c] sm:$0xf]
    %v2717 = vld [vmem:[#allocation8 + $0x70] sm:$0xf]
    %v2718 = vld [vmem:[#allocation8 + $0x74] sm:$0xf]
    %v2719 = vld [vmem:[#allocation8 + $0x78] sm:$0xf]
    %v2720 = vld [vmem:[#allocation8 + $0x7c] sm:$0xf]
    %v2721 = vld [vmem:[#allocation8 + $0x80] sm:$0xf]
    %v2722 = vld [vmem:[#allocation8 + $0x84] sm:$0xf]
    %v2723 = vld [vmem:[#allocation8 + $0x88] sm:$0xf]
    %v2724 = vld [vmem:[#allocation8 + $0x8c] sm:$0xf]
    %v2725 = vld [vmem:[#allocation8 + $0x90] sm:$0xf]
    %v2726 = vld [vmem:[#allocation8 + $0x94] sm:$0xf]
    %v2727 = vld [vmem:[#allocation8 + $0x98] sm:$0xf]
    %v2728 = vld [vmem:[#allocation8 + $0x9c] sm:$0xf]
    %v2729 = vld [vmem:[#allocation8 + $0xa0] sm:$0xf]
    %v2730 = vld [vmem:[#allocation8 + $0xa4] sm:$0xf]
    %v2731 = vld [vmem:[#allocation8 + $0xa8] sm:$0xf]
    %v2732 = vld [vmem:[#allocation8 + $0xac] sm:$0xf]
    %v2733 = vld [vmem:[#allocation8 + $0xb0] sm:$0xf]
    %v2734 = vld [vmem:[#allocation8 + $0xb4] sm:$0xf]
    %v2735 = vld [vmem:[#allocation8 + $0xb8] sm:$0xf]
    %v2736 = vld [vmem:[#allocation8 + $0xbc] sm:$0xf]
    %v2737 = vld [vmem:[#allocation8 + $0xc0] sm:$0xf]
    %v2738 = vld [vmem:[#allocation8 + $0xc4] sm:$0xf]
    %v2739 = vld [vmem:[#allocation8 + $0xc8] sm:$0xf]
    %v2740 = vld [vmem:[#allocation8 + $0xcc] sm:$0xf]
    %v2741 = vld [vmem:[#allocation8 + $0xd0] sm:$0xf]
    %v2742 = vld [vmem:[#allocation8 + $0xd4] sm:$0xf]
    %v2743 = vld [vmem:[#allocation8 + $0xd8] sm:$0xf]
    %v2744 = vld [vmem:[#allocation8 + $0xdc] sm:$0xf]
    %v2745 = vld [vmem:[#allocation8 + $0xe0] sm:$0xf]
    %v2746 = vld [vmem:[#allocation8 + $0xe4] sm:$0xf]
    %v2747 = vld [vmem:[#allocation8 + $0xe8] sm:$0xf]
    %v2748 = vld [vmem:[#allocation8 + $0xec] sm:$0xf]
    %v2749 = vld [vmem:[#allocation8 + $0xf0] sm:$0xf]
    %v2750 = vld [vmem:[#allocation8 + $0xf4] sm:$0xf]
    %v2751 = vld [vmem:[#allocation8 + $0xf8] sm:$0xf]
    %v2752 = vld [vmem:[#allocation8 + $0xfc] sm:$0xf]
    %v2753 = vld [vmem:[#allocation8 + $0x100] sm:$0xf]
    %v2754 = vld [vmem:[#allocation8 + $0x104] sm:$0xf]
    %v2755 = vld [vmem:[#allocation8 + $0x108] sm:$0xf]
    %v2756 = vld [vmem:[#allocation8 + $0x10c] sm:$0xf]
    %v2757 = vld [vmem:[#allocation8 + $0x110] sm:$0xf]
    %v2758 = vld [vmem:[#allocation8 + $0x114] sm:$0xf]
    %v2759 = vld [vmem:[#allocation8 + $0x118] sm:$0xf]
    %v2760 = vld [vmem:[#allocation8 + $0x11c] sm:$0xf]
    %v2761 = vld [vmem:[#allocation8 + $0x120] sm:$0xf]
    %v2762 = vld [vmem:[#allocation8 + $0x124] sm:$0xf]
    %v2763 = vld [vmem:[#allocation8 + $0x128] sm:$0xf]
    %v2764 = vld [vmem:[#allocation8 + $0x12c] sm:$0xf]
    %v2765 = vld [vmem:[#allocation8 + $0x130] sm:$0xf]
    %v2766 = vld [vmem:[#allocation8 + $0x134] sm:$0xf]
    %v2767 = vld [vmem:[#allocation8 + $0x138] sm:$0xf]
    %v2768 = vld [vmem:[#allocation8 + $0x13c] sm:$0xf]
    %v2769 = vld [vmem:[#allocation8 + $0x140] sm:$0xf]
    %v2770 = vld [vmem:[#allocation8 + $0x144] sm:$0xf]
    %v2771 = vld [vmem:[#allocation8 + $0x148] sm:$0xf]
    %v2772 = vld [vmem:[#allocation8 + $0x14c] sm:$0xf]
    %v2773 = vld [vmem:[#allocation8 + $0x150] sm:$0xf]
    %v2774 = vld [vmem:[#allocation8 + $0x154] sm:$0xf]
    %v2775 = vld [vmem:[#allocation8 + $0x158] sm:$0xf]
    %v2776 = vld [vmem:[#allocation8 + $0x15c] sm:$0xf]
    %v2777 = vld [vmem:[#allocation8 + $0x160] sm:$0xf]
    %v2778 = vld [vmem:[#allocation8 + $0x164] sm:$0xf]
    %v2779 = vld [vmem:[#allocation8 + $0x168] sm:$0xf]
    %v2780 = vld [vmem:[#allocation8 + $0x16c] sm:$0xf]
    %v2781 = vld [vmem:[#allocation8 + $0x170] sm:$0xf]
    %v2782 = vld [vmem:[#allocation8 + $0x174] sm:$0xf]
    %v2783 = vld [vmem:[#allocation8 + $0x178] sm:$0xf]
    %v2784 = vld [vmem:[#allocation8 + $0x17c] sm:$0xf]
    %v2785 = vld [vmem:[%s6] sm:$0x1]
    %v2787 = vlaneseq
    %v2788 = vshrl.u32 %v2787, 7
    %v2789 = vsub.s32 0, %v2788
    %v2790 = vrot.slane %v2785, %v2789
    %v2888 = vunpack.c.l.b16 %v2689
    %v2889 = vunpack.c.l.b16 %v2690
    %v2890 = vunpack.c.l.b16 %v2691
    %v2891 = vunpack.c.l.b16 %v2692
    %v2892 = vunpack.c.l.b16 %v2693
    %v2893 = vunpack.c.l.b16 %v2694
    %v2894 = vunpack.c.l.b16 %v2695
    %v2895 = vunpack.c.l.b16 %v2696
    %v2896 = vunpack.c.l.b16 %v2697
    %v2897 = vunpack.c.l.b16 %v2698
    %v2898 = vunpack.c.l.b16 %v2699
    %v2899 = vunpack.c.l.b16 %v2700
    %v2900 = vunpack.c.l.b16 %v2701
    %v2901 = vunpack.c.l.b16 %v2702
    %v2902 = vunpack.c.l.b16 %v2703
    %v2903 = vunpack.c.l.b16 %v2704
    %v2904 = vunpack.c.l.b16 %v2705
    %v2905 = vunpack.c.l.b16 %v2706
    %v2906 = vunpack.c.l.b16 %v2707
    %v2907 = vunpack.c.l.b16 %v2708
    %v2908 = vunpack.c.l.b16 %v2709
    %v2909 = vunpack.c.l.b16 %v2710
    %v2910 = vunpack.c.l.b16 %v2711
    %v2911 = vunpack.c.l.b16 %v2712
    %v2912 = vunpack.c.l.b16 %v2713
    %v2913 = vunpack.c.l.b16 %v2714
    %v2914 = vunpack.c.l.b16 %v2715
    %v2915 = vunpack.c.l.b16 %v2716
    %v2916 = vunpack.c.l.b16 %v2717
    %v2917 = vunpack.c.l.b16 %v2718
    %v2918 = vunpack.c.l.b16 %v2719
    %v2919 = vunpack.c.l.b16 %v2720
    %v2920 = vunpack.c.l.b16 %v2721
    %v2921 = vunpack.c.l.b16 %v2722
    %v2922 = vunpack.c.l.b16 %v2723
    %v2923 = vunpack.c.l.b16 %v2724
    %v2924 = vunpack.c.l.b16 %v2725
    %v2925 = vunpack.c.l.b16 %v2726
    %v2926 = vunpack.c.l.b16 %v2727
    %v2927 = vunpack.c.l.b16 %v2728
    %v2928 = vunpack.c.l.b16 %v2729
    %v2929 = vunpack.c.l.b16 %v2730
    %v2930 = vunpack.c.l.b16 %v2731
    %v2931 = vunpack.c.l.b16 %v2732
    %v2932 = vunpack.c.l.b16 %v2733
    %v2933 = vunpack.c.l.b16 %v2734
    %v2934 = vunpack.c.l.b16 %v2735
    %v2935 = vunpack.c.l.b16 %v2736
    %v2936 = vunpack.c.l.b16 %v2737
    %v2937 = vunpack.c.l.b16 %v2738
    %v2938 = vunpack.c.l.b16 %v2739
    %v2939 = vunpack.c.l.b16 %v2740
    %v2940 = vunpack.c.l.b16 %v2741
    %v2941 = vunpack.c.l.b16 %v2742
    %v2942 = vunpack.c.l.b16 %v2743
    %v2943 = vunpack.c.l.b16 %v2744
    %v2944 = vunpack.c.l.b16 %v2745
    %v2945 = vunpack.c.l.b16 %v2746
    %v2946 = vunpack.c.l.b16 %v2747
    %v2947 = vunpack.c.l.b16 %v2748
    %v2948 = vunpack.c.l.b16 %v2749
    %v2949 = vunpack.c.l.b16 %v2750
    %v2950 = vunpack.c.l.b16 %v2751
    %v2951 = vunpack.c.l.b16 %v2752
    %v2952 = vunpack.c.l.b16 %v2753
    %v2953 = vunpack.c.l.b16 %v2754
    %v2954 = vunpack.c.l.b16 %v2755
    %v2955 = vunpack.c.l.b16 %v2756
    %v2956 = vunpack.c.l.b16 %v2757
    %v2957 = vunpack.c.l.b16 %v2758
    %v2958 = vunpack.c.l.b16 %v2759
    %v2959 = vunpack.c.l.b16 %v2760
    %v2960 = vunpack.c.l.b16 %v2761
    %v2961 = vunpack.c.l.b16 %v2762
    %v2962 = vunpack.c.l.b16 %v2763
    %v2963 = vunpack.c.l.b16 %v2764
    %v2964 = vunpack.c.l.b16 %v2765
    %v2965 = vunpack.c.l.b16 %v2766
    %v2966 = vunpack.c.l.b16 %v2767
    %v2967 = vunpack.c.l.b16 %v2768
    %v2968 = vunpack.c.l.b16 %v2769
    %v2969 = vunpack.c.l.b16 %v2770
    %v2970 = vunpack.c.l.b16 %v2771
    %v2971 = vunpack.c.l.b16 %v2772
    %v2972 = vunpack.c.l.b16 %v2773
    %v2973 = vunpack.c.l.b16 %v2774
    %v2974 = vunpack.c.l.b16 %v2775
    %v2975 = vunpack.c.l.b16 %v2776
    %v2976 = vunpack.c.l.b16 %v2777
    %v2977 = vunpack.c.l.b16 %v2778
    %v2978 = vunpack.c.l.b16 %v2779
    %v2979 = vunpack.c.l.b16 %v2780
    %v2980 = vunpack.c.l.b16 %v2781
    %v2981 = vunpack.c.l.b16 %v2782
    %v2982 = vunpack.c.l.b16 %v2783
    %v2983 = vunpack.c.l.b16 %v2784
    %v2984 = vpack.c.b16 %v2889, %v2888
    %v2985 = vpack.c.b16 %v2891, %v2890
    %v2986 = vpack.c.b16 %v2893, %v2892
    %v2987 = vpack.c.b16 %v2895, %v2894
    %v2988 = vpack.c.b16 %v2897, %v2896
    %v2989 = vpack.c.b16 %v2899, %v2898
    %v2990 = vpack.c.b16 %v2901, %v2900
    %v2991 = vpack.c.b16 %v2903, %v2902
    %v2992 = vpack.c.b16 %v2905, %v2904
    %v2993 = vpack.c.b16 %v2907, %v2906
    %v2994 = vpack.c.b16 %v2909, %v2908
    %v2995 = vpack.c.b16 %v2911, %v2910
    %v2996 = vpack.c.b16 %v2913, %v2912
    %v2997 = vpack.c.b16 %v2915, %v2914
    %v2998 = vpack.c.b16 %v2917, %v2916
    %v2999 = vpack.c.b16 %v2919, %v2918
    %v3000 = vpack.c.b16 %v2921, %v2920
    %v3001 = vpack.c.b16 %v2923, %v2922
    %v3002 = vpack.c.b16 %v2925, %v2924
    %v3003 = vpack.c.b16 %v2927, %v2926
    %v3004 = vpack.c.b16 %v2929, %v2928
    %v3005 = vpack.c.b16 %v2931, %v2930
    %v3006 = vpack.c.b16 %v2933, %v2932
    %v3007 = vpack.c.b16 %v2935, %v2934
    %v3008 = vpack.c.b16 %v2937, %v2936
    %v3009 = vpack.c.b16 %v2939, %v2938
    %v3010 = vpack.c.b16 %v2941, %v2940
    %v3011 = vpack.c.b16 %v2943, %v2942
    %v3012 = vpack.c.b16 %v2945, %v2944
    %v3013 = vpack.c.b16 %v2947, %v2946
    %v3014 = vpack.c.b16 %v2949, %v2948
    %v3015 = vpack.c.b16 %v2951, %v2950
    %v3016 = vpack.c.b16 %v2953, %v2952
    %v3017 = vpack.c.b16 %v2955, %v2954
    %v3018 = vpack.c.b16 %v2957, %v2956
    %v3019 = vpack.c.b16 %v2959, %v2958
    %v3020 = vpack.c.b16 %v2961, %v2960
    %v3021 = vpack.c.b16 %v2963, %v2962
    %v3022 = vpack.c.b16 %v2965, %v2964
    %v3023 = vpack.c.b16 %v2967, %v2966
    %v3024 = vpack.c.b16 %v2969, %v2968
    %v3025 = vpack.c.b16 %v2971, %v2970
    %v3026 = vpack.c.b16 %v2973, %v2972
    %v3027 = vpack.c.b16 %v2975, %v2974
    %v3028 = vpack.c.b16 %v2977, %v2976
    %v3029 = vpack.c.b16 %v2979, %v2978
    %v3030 = vpack.c.b16 %v2981, %v2980
    %v3031 = vpack.c.b16 %v2983, %v2982
    %3080 = vmatprep.subr.bf16.mxu0 0
    %3081 = vmatpush1.bf16.msra.mxu0 %v2984
    %3082 = vmatprep.subr.bf16.mxu0 0
    %3083 = vmatpush1.bf16.msra.mxu0 %v2985
    %3084 = vmatprep.subr.bf16.mxu0 0
    %3085 = vmatpush1.bf16.msra.mxu0 %v2986
    %3086 = vmatprep.subr.bf16.mxu0 0
    %3087 = vmatpush1.bf16.msra.mxu0 %v2987
    %3088 = vmatprep.subr.bf16.mxu0 0
    %3089 = vmatpush1.bf16.msra.mxu0 %v2988
    %3090 = vmatprep.subr.bf16.mxu0 0
    %3091 = vmatpush1.bf16.msra.mxu0 %v2989
    %3092 = vmatprep.subr.bf16.mxu0 0
    %3093 = vmatpush1.bf16.msra.mxu0 %v2990
    %3094 = vmatprep.subr.bf16.mxu0 0
    %3095 = vmatpush1.bf16.msra.mxu0 %v2991
    %3096 = vmatprep.subr.bf16.mxu0 0
    %3097 = vmatpush1.bf16.msra.mxu0 %v2992
    %3098 = vmatprep.subr.bf16.mxu0 0
    %3099 = vmatpush1.bf16.msra.mxu0 %v2993
    %3100 = vmatprep.subr.bf16.mxu0 0
    %3101 = vmatpush1.bf16.msra.mxu0 %v2994
    %3102 = vmatprep.subr.bf16.mxu0 0
    %3103 = vmatpush1.bf16.msra.mxu0 %v2995
    %3104 = vmatprep.subr.bf16.mxu0 0
    %3105 = vmatpush1.bf16.msra.mxu0 %v2996
    %3106 = vmatprep.subr.bf16.mxu0 0
    %3107 = vmatpush1.bf16.msra.mxu0 %v2997
    %3108 = vmatprep.subr.bf16.mxu0 0
    %3109 = vmatpush1.bf16.msra.mxu0 %v2998
    %3110 = vmatprep.subr.bf16.mxu0 0
    %3111 = vmatpush1.bf16.msra.mxu0 %v2999
    %3112 = vmatprep.mubr.bf16.mxu0 %v2642
    %3113 = vmatmul.mubr.bf16.gmra.mrb[0].mxu0 %v2641
    %v3114 = vpop.f32.mrb[0].mxu0
    %v3115 = vadd.f32 %v2790, %v3114
    %v3116 = vpop.f32.mrb[0].mxu0
    %v3117 = vpop.f32.mrb[0].mxu0
    %v3118 = vadd.f32 %v2790, %v3117
    %v3119 = vpop.f32.mrb[0].mxu0
    %3120 = vmatprep.mubr.bf16.mxu0 %v2648
    %3121 = vmatmul.mubr.bf16.gmra.mrb[0].mxu0 %v2647
    %v3122 = vpop.f32.mrb[0].mxu0
    %v3123 = vadd.f32 %v2790, %v3122
    %v3124 = vpop.f32.mrb[0].mxu0
    %v3125 = vpop.f32.mrb[0].mxu0
    %v3126 = vadd.f32 %v2790, %v3125
    %v3127 = vpop.f32.mrb[0].mxu0
    %3128 = vmatprep.mubr.bf16.mxu0 %v2654
    %3129 = vmatmul.mubr.bf16.gmra.mrb[0].mxu0 %v2653
    %v3130 = vpop.f32.mrb[0].mxu0
    %v3131 = vadd.f32 %v2790, %v3130
    %v3132 = vpop.f32.mrb[0].mxu0
    %v3133 = vpop.f32.mrb[0].mxu0
    %v3134 = vadd.f32 %v2790, %v3133
    %v3135 = vpop.f32.mrb[0].mxu0
    %3136 = vmatprep.mubr.bf16.mxu0 %v2660
    %3137 = vmatmul.mubr.bf16.gmra.mrb[0].mxu0 %v2659
    %v3138 = vpop.f32.mrb[0].mxu0
    %v3139 = vadd.f32 %v2790, %v3138
    %v3140 = vpop.f32.mrb[0].mxu0
    %v3141 = vpop.f32.mrb[0].mxu0
    %v3142 = vadd.f32 %v2790, %v3141
    %v3143 = vpop.f32.mrb[0].mxu0
    %3144 = vmatprep.mubr.bf16.mxu0 %v2666
    %3145 = vmatmul.mubr.bf16.gmra.mrb[0].mxu0 %v2665
    %v3146 = vpop.f32.mrb[0].mxu0
    %v3147 = vadd.f32 %v2790, %v3146
    %v3148 = vpop.f32.mrb[0].mxu0
    %v3149 = vpop.f32.mrb[0].mxu0
    %v3150 = vadd.f32 %v2790, %v3149
    %v3151 = vpop.f32.mrb[0].mxu0
    %3152 = vmatprep.mubr.bf16.mxu0 %v2672
    %3153 = vmatmul.mubr.bf16.gmra.mrb[0].mxu0 %v2671
    %v3154 = vpop.f32.mrb[0].mxu0
    %v3155 = vadd.f32 %v2790, %v3154
    %v3156 = vpop.f32.mrb[0].mxu0
    %v3157 = vpop.f32.mrb[0].mxu0
    %v3158 = vadd.f32 %v2790, %v3157
    %v3159 = vpop.f32.mrb[0].mxu0
    %3160 = vmatprep.mubr.bf16.mxu0 %v2678
    %3161 = vmatmul.mubr.bf16.gmra.mrb[0].mxu0 %v2677
    %v3162 = vpop.f32.mrb[0].mxu0
    %v3163 = vadd.f32 %v2790, %v3162
    %v3164 = vpop.f32.mrb[0].mxu0
    %v3165 = vpop.f32.mrb[0].mxu0
    %v3166 = vadd.f32 %v2790, %v3165
    %v3167 = vpop.f32.mrb[0].mxu0
    %3168 = vmatprep.mubr.bf16.mxu0 %v2684
    %3169 = vmatmul.mubr.bf16.gmra.mrb[0].mxu0 %v2683
    %v3170 = vpop.f32.mrb[0].mxu0
    %v3171 = vadd.f32 %v2790, %v3170
    %v3172 = vpop.f32.mrb[0].mxu0
    %v3173 = vpop.f32.mrb[0].mxu0
    %v3174 = vadd.f32 %v2790, %v3173
    %v3175 = vpop.f32.mrb[0].mxu0
    %3176 = vdwg.mxu0
    %3177 = vmatprep.subr.bf16.mxu0 0
    %3178 = vmatpush1.bf16.msra.mxu0 %v3000
    %3179 = vmatprep.subr.bf16.mxu0 0
    %3180 = vmatpush1.bf16.msra.mxu0 %v3001
    %3181 = vmatprep.subr.bf16.mxu0 0
    %3182 = vmatpush1.bf16.msra.mxu0 %v3002
    %3183 = vmatprep.subr.bf16.mxu0 0
    %3184 = vmatpush1.bf16.msra.mxu0 %v3003
    %3185 = vmatprep.subr.bf16.mxu0 0
    %3186 = vmatpush1.bf16.msra.mxu0 %v3004
    %3187 = vmatprep.subr.bf16.mxu0 0
    %3188 = vmatpush1.bf16.msra.mxu0 %v3005
    %3189 = vmatprep.subr.bf16.mxu0 0
    %3190 = vmatpush1.bf16.msra.mxu0 %v3006
    %3191 = vmatprep.subr.bf16.mxu0 0
    %3192 = vmatpush1.bf16.msra.mxu0 %v3007
    %3193 = vmatprep.subr.bf16.mxu0 0
    %3194 = vmatpush1.bf16.msra.mxu0 %v3008
    %3195 = vmatprep.subr.bf16.mxu0 0
    %3196 = vmatpush1.bf16.msra.mxu0 %v3009
    %3197 = vmatprep.subr.bf16.mxu0 0
    %3198 = vmatpush1.bf16.msra.mxu0 %v3010
    %3199 = vmatprep.subr.bf16.mxu0 0
    %3200 = vmatpush1.bf16.msra.mxu0 %v3011
    %3201 = vmatprep.subr.bf16.mxu0 0
    %3202 = vmatpush1.bf16.msra.mxu0 %v3012
    %3203 = vmatprep.subr.bf16.mxu0 0
    %3204 = vmatpush1.bf16.msra.mxu0 %v3013
    %3205 = vmatprep.subr.bf16.mxu0 0
    %3206 = vmatpush1.bf16.msra.mxu0 %v3014
    %3207 = vmatprep.subr.bf16.mxu0 0
    %3208 = vmatpush1.bf16.msra.mxu0 %v3015
    %3209 = vmatprep.mubr.bf16.mxu0 %v2644
    %3210 = vmatmul.mubr.bf16.gmra.mrb[0].mxu0 %v2643
    %v3211 = vpop.f32.mrb[0].mxu0
    %v3212 = vadd.f32 %v3115, %v3211
    %v3213 = vpop.f32.mrb[0].mxu0
    %v3214 = vpop.f32.mrb[0].mxu0
    %v3215 = vadd.f32 %v3118, %v3214
    %v3216 = vpop.f32.mrb[0].mxu0
    %3217 = vmatprep.mubr.bf16.mxu0 %v2650
    %3218 = vmatmul.mubr.bf16.gmra.mrb[0].mxu0 %v2649
    %v3219 = vpop.f32.mrb[0].mxu0
    %v3220 = vadd.f32 %v3123, %v3219
    %v3221 = vpop.f32.mrb[0].mxu0
    %v3222 = vpop.f32.mrb[0].mxu0
    %v3223 = vadd.f32 %v3126, %v3222
    %v3224 = vpop.f32.mrb[0].mxu0
    %3225 = vmatprep.mubr.bf16.mxu0 %v2656
    %3226 = vmatmul.mubr.bf16.gmra.mrb[0].mxu0 %v2655
    %v3227 = vpop.f32.mrb[0].mxu0
    %v3228 = vadd.f32 %v3131, %v3227
    %v3229 = vpop.f32.mrb[0].mxu0
    %v3230 = vpop.f32.mrb[0].mxu0
    %v3231 = vadd.f32 %v3134, %v3230
    %v3232 = vpop.f32.mrb[0].mxu0
    %3233 = vmatprep.mubr.bf16.mxu0 %v2662
    %3234 = vmatmul.mubr.bf16.gmra.mrb[0].mxu0 %v2661
    %v3235 = vpop.f32.mrb[0].mxu0
    %v3236 = vadd.f32 %v3139, %v3235
    %v3237 = vpop.f32.mrb[0].mxu0
    %v3238 = vpop.f32.mrb[0].mxu0
    %v3239 = vadd.f32 %v3142, %v3238
    %v3240 = vpop.f32.mrb[0].mxu0
    %3241 = vmatprep.mubr.bf16.mxu0 %v2668
    %3242 = vmatmul.mubr.bf16.gmra.mrb[0].mxu0 %v2667
    %v3243 = vpop.f32.mrb[0].mxu0
    %v3244 = vadd.f32 %v3147, %v3243
    %v3245 = vpop.f32.mrb[0].mxu0
    %v3246 = vpop.f32.mrb[0].mxu0
    %v3247 = vadd.f32 %v3150, %v3246
    %v3248 = vpop.f32.mrb[0].mxu0
    %3249 = vmatprep.mubr.bf16.mxu0 %v2674
    %3250 = vmatmul.mubr.bf16.gmra.mrb[0].mxu0 %v2673
    %v3251 = vpop.f32.mrb[0].mxu0
    %v3252 = vadd.f32 %v3155, %v3251
    %v3253 = vpop.f32.mrb[0].mxu0
    %v3254 = vpop.f32.mrb[0].mxu0
    %v3255 = vadd.f32 %v3158, %v3254
    %v3256 = vpop.f32.mrb[0].mxu0
    %3257 = vmatprep.mubr.bf16.mxu0 %v2680
    %3258 = vmatmul.mubr.bf16.gmra.mrb[0].mxu0 %v2679
    %v3259 = vpop.f32.mrb[0].mxu0
    %v3260 = vadd.f32 %v3163, %v3259
    %v3261 = vpop.f32.mrb[0].mxu0
    %v3262 = vpop.f32.mrb[0].mxu0
    %v3263 = vadd.f32 %v3166, %v3262
    %v3264 = vpop.f32.mrb[0].mxu0
    %3265 = vmatprep.mubr.bf16.mxu0 %v2686
    %3266 = vmatmul.mubr.bf16.gmra.mrb[0].mxu0 %v2685
    %v3267 = vpop.f32.mrb[0].mxu0
    %v3268 = vadd.f32 %v3171, %v3267
    %v3269 = vpop.f32.mrb[0].mxu0
    %v3270 = vpop.f32.mrb[0].mxu0
    %v3271 = vadd.f32 %v3174, %v3270
    %v3272 = vpop.f32.mrb[0].mxu0
    %3273 = vdwg.mxu0
    %3274 = vmatprep.subr.bf16.mxu0 0
    %3275 = vmatpush1.bf16.msra.mxu0 %v3016
    %3276 = vmatprep.subr.bf16.mxu0 0
    %3277 = vmatpush1.bf16.msra.mxu0 %v3017
    %3278 = vmatprep.subr.bf16.mxu0 0
    %3279 = vmatpush1.bf16.msra.mxu0 %v3018
    %3280 = vmatprep.subr.bf16.mxu0 0
    %3281 = vmatpush1.bf16.msra.mxu0 %v3019
    %3282 = vmatprep.subr.bf16.mxu0 0
    %3283 = vmatpush1.bf16.msra.mxu0 %v3020
    %3284 = vmatprep.subr.bf16.mxu0 0
    %3285 = vmatpush1.bf16.msra.mxu0 %v3021
    %3286 = vmatprep.subr.bf16.mxu0 0
    %3287 = vmatpush1.bf16.msra.mxu0 %v3022
    %3288 = vmatprep.subr.bf16.mxu0 0
    %3289 = vmatpush1.bf16.msra.mxu0 %v3023
    %3290 = vmatprep.subr.bf16.mxu0 0
    %3291 = vmatpush1.bf16.msra.mxu0 %v3024
    %3292 = vmatprep.subr.bf16.mxu0 0
    %3293 = vmatpush1.bf16.msra.mxu0 %v3025
    %3294 = vmatprep.subr.bf16.mxu0 0
    %3295 = vmatpush1.bf16.msra.mxu0 %v3026
    %3296 = vmatprep.subr.bf16.mxu0 0
    %3297 = vmatpush1.bf16.msra.mxu0 %v3027
    %3298 = vmatprep.subr.bf16.mxu0 0
    %3299 = vmatpush1.bf16.msra.mxu0 %v3028
    %3300 = vmatprep.subr.bf16.mxu0 0
    %3301 = vmatpush1.bf16.msra.mxu0 %v3029
    %3302 = vmatprep.subr.bf16.mxu0 0
    %3303 = vmatpush1.bf16.msra.mxu0 %v3030
    %3304 = vmatprep.subr.bf16.mxu0 0
    %3305 = vmatpush1.bf16.msra.mxu0 %v3031
    %3306 = vmatprep.mubr.bf16.mxu0 %v2646
    %3307 = vmatmul.mubr.bf16.gmra.mrb[0].mxu0 %v2645
    %v3308 = vpop.f32.mrb[0].mxu0
    %v3309 = vadd.f32 %v3212, %v3308
    %v3310 = vpop.f32.mrb[0].mxu0
    %v3311 = vpop.f32.mrb[0].mxu0
    %v3312 = vadd.f32 %v3215, %v3311
    %v3313 = vpop.f32.mrb[0].mxu0
    %3314 = vmatprep.mubr.bf16.mxu0 %v2652
    %3315 = vmatmul.mubr.bf16.gmra.mrb[0].mxu0 %v2651
    %v3316 = vpop.f32.mrb[0].mxu0
    %v3317 = vadd.f32 %v3220, %v3316
    %v3318 = vpop.f32.mrb[0].mxu0
    %v3319 = vpop.f32.mrb[0].mxu0
    %v3320 = vadd.f32 %v3223, %v3319
    %v3321 = vpop.f32.mrb[0].mxu0
    %3322 = vmatprep.mubr.bf16.mxu0 %v2658
    %3323 = vmatmul.mubr.bf16.gmra.mrb[0].mxu0 %v2657
    %v3324 = vpop.f32.mrb[0].mxu0
    %v3325 = vadd.f32 %v3228, %v3324
    %v3326 = vpop.f32.mrb[0].mxu0
    %v3327 = vpop.f32.mrb[0].mxu0
    %v3328 = vadd.f32 %v3231, %v3327
    %v3329 = vpop.f32.mrb[0].mxu0
    %3330 = vmatprep.mubr.bf16.mxu0 %v2664
    %3331 = vmatmul.mubr.bf16.gmra.mrb[0].mxu0 %v2663
    %v3332 = vpop.f32.mrb[0].mxu0
    %v3333 = vadd.f32 %v3236, %v3332
    %v3334 = vpop.f32.mrb[0].mxu0
    %v3335 = vpop.f32.mrb[0].mxu0
    %v3336 = vadd.f32 %v3239, %v3335
    %v3337 = vpop.f32.mrb[0].mxu0
    %3338 = vmatprep.mubr.bf16.mxu0 %v2670
    %3339 = vmatmul.mubr.bf16.gmra.mrb[0].mxu0 %v2669
    %v3340 = vpop.f32.mrb[0].mxu0
    %v3341 = vadd.f32 %v3244, %v3340
    %v3342 = vpop.f32.mrb[0].mxu0
    %v3343 = vpop.f32.mrb[0].mxu0
    %v3344 = vadd.f32 %v3247, %v3343
    %v3345 = vpop.f32.mrb[0].mxu0
    %3346 = vmatprep.mubr.bf16.mxu0 %v2676
    %3347 = vmatmul.mubr.bf16.gmra.mrb[0].mxu0 %v2675
    %v3348 = vpop.f32.mrb[0].mxu0
    %v3349 = vadd.f32 %v3252, %v3348
    %v3350 = vpop.f32.mrb[0].mxu0
    %v3351 = vpop.f32.mrb[0].mxu0
    %v3352 = vadd.f32 %v3255, %v3351
    %v3353 = vpop.f32.mrb[0].mxu0
    %3354 = vmatprep.mubr.bf16.mxu0 %v2682
    %3355 = vmatmul.mubr.bf16.gmra.mrb[0].mxu0 %v2681
    %v3356 = vpop.f32.mrb[0].mxu0
    %v3357 = vadd.f32 %v3260, %v3356
    %v3358 = vpop.f32.mrb[0].mxu0
    %v3359 = vpop.f32.mrb[0].mxu0
    %v3360 = vadd.f32 %v3263, %v3359
    %v3361 = vpop.f32.mrb[0].mxu0
    %3362 = vmatprep.mubr.bf16.mxu0 %v2688
    %3363 = vmatmul.mubr.bf16.gmra.mrb[0].mxu0 %v2687
    %v3364 = vpop.f32.mrb[0].mxu0
    %v3365 = vadd.f32 %v3268, %v3364
    %v3366 = vpop.f32.mrb[0].mxu0
    %v3367 = vpop.f32.mrb[0].mxu0
    %v3368 = vadd.f32 %v3271, %v3367
    %v3369 = vpop.f32.mrb[0].mxu0
    %3370 = vdwg.mxu0
    %3371 = vst [vmem:[#allocation10] sm:$0xff] %v3309
    %3372 = vst [vmem:[#allocation10 + $0x8] sm:$0xff] %v3312
    %3373 = vst [vmem:[#allocation10 + $0x10] sm:$0xff] %v3317
    %3374 = vst [vmem:[#allocation10 + $0x18] sm:$0xff] %v3320
    %3375 = vst [vmem:[#allocation10 + $0x20] sm:$0xff] %v3325
    %3376 = vst [vmem:[#allocation10 + $0x28] sm:$0xff] %v3328
    %3377 = vst [vmem:[#allocation10 + $0x30] sm:$0xff] %v3333
    %3378 = vst [vmem:[#allocation10 + $0x38] sm:$0xff] %v3336
    %3379 = vst [vmem:[#allocation10 + $0x40] sm:$0xff] %v3341
    %3380 = vst [vmem:[#allocation10 + $0x48] sm:$0xff] %v3344
    %3381 = vst [vmem:[#allocation10 + $0x50] sm:$0xff] %v3349
    %3382 = vst [vmem:[#allocation10 + $0x58] sm:$0xff] %v3352
    %3383 = vst [vmem:[#allocation10 + $0x60] sm:$0xff] %v3357
    %3384 = vst [vmem:[#allocation10 + $0x68] sm:$0xff] %v3360
    %3385 = vst [vmem:[#allocation10 + $0x70] sm:$0xff] %v3365
    %3386 = vst [vmem:[#allocation10 + $0x78] sm:$0xff] %v3368
    // Predicated region
    $region46: #{tpu_custom_call.1} parent=1 // pred_check
      _
    $region47: #{tpu_custom_call.1} parent=1 // pred_check_branch
      %3388 = sbr.rel (0) target = $region49
    $region48: #{tpu_custom_call.1} parent=1 // pred_region
      %s3390 = ssub.s32 2048, 2048
      %3391 = vsyncadd [#allocation4], %s3390
      %s3392 = sshll.u32 [#allocation10], 4
      %s3393 = int_to_ptr.vmem [resolvable:$true] %s3392
      %3398 = dma.vmem_to_hbm [thread:$0]  %s3393, 2048, %s7, [#allocation4], 128, 128, 8
    $region49: #{tpu_custom_call.1} parent=1 // pred_fallthru
      _
    // Predicated region
    $region50: #{tpu_custom_call.1} parent=1 // pred_check
      _
    $region51: #{tpu_custom_call.1} parent=1 // pred_check_branch
      %3400 = sbr.rel (0) target = $region53
    $region52: #{tpu_custom_call.1} parent=1 // pred_region
      %3401 = dma.done [#allocation4], 2048
    $region53: #{tpu_custom_call.1} parent=1 // pred_fallthru
      _
    %3402 = vsyncpa [#allocation3], 1
    %3403 = vsyncpa [#allocation6], 1
    %3404 = vsyncpa [#allocation9], 1
    %3405 = vsyncpa [#allocation4], 1

</llo_original>
